<compile_context>
chip_gen: v7x
topology: tpu7x:2x2x1
jax: 0.10.0
libtpu: 0.0.40
codegen_flags: <defaults>
</compile_context>

<pallas_src>
import functools

import jax
import jax.numpy as jnp
from jax import lax
from jax.experimental import pallas as pl
from jax.experimental.pallas import tpu as pltpu

TEMPERATURE = 0.1
BASE_TEMPERATURE = 0.1


def _round_up(x, m):
    return ((x + m - 1) // m) * m


def _supcon_kernel(frow_ref, fcol_ref, cnt_ref, pos_ref, out_ref,
                   m_sc, l_sc, *, inv_temp, loss_scale, n_valid):
    """One (row_tile, col_tile) step of the streaming SupCon loss.

    frow_ref: [TM, Dp] anchor features (input dtype)
    fcol_ref: [TN, Dp] contrast features (input dtype)
    cnt_ref : [TM, 1]  positive counts (precomputed, label-only)
    pos_ref : [TM, 1]  per-anchor positive-logit sums (precomputed)
    out_ref : [TM, 1]  per-anchor loss rows (written on the last column step)
    m_sc/l_sc: [TM, 1] running row-max / row sum-exp (online logsumexp).
    """
    i = pl.program_id(0)
    j = pl.program_id(1)
    tm = frow_ref.shape[0]
    tn = fcol_ref.shape[0]

    @pl.when(j == 0)
    def _():
        m_sc[...] = jnp.full((tm, 1), -jnp.inf, jnp.float32)
        l_sc[...] = jnp.zeros((tm, 1), jnp.float32)

    # MXU operands in input dtype (bf16 stays bf16); fold 1/temperature into the
    # small [TM, Dp] row tile; accumulate in f32.
    fr = frow_ref[...] * inv_temp
    fc = fcol_ref[...]
    raw = lax.dot_general(fr, fc,
                          dimension_numbers=(((1,), (1,)), ((), ())),
                          preferred_element_type=jnp.float32)        # [TM, TN]

    # Scalar-gated masking: only tiles intersecting the diagonal or the padded
    # column tail pay for iotas / compares / select.
    row_start = i * tm
    col_start = j * tn
    hits_diag = (row_start < col_start + tn) & (col_start < row_start + tm)
    hits_pad = col_start + tn > n_valid
    needs_mask = hits_diag | hits_pad

    def _online_lse_update(z):
        m_prev = m_sc[...]
        m_new = jnp.maximum(m_prev, jnp.max(z, axis=1, keepdims=True))
        l_sc[...] = (jnp.exp(m_prev - m_new) * l_sc[...]
                     + jnp.sum(jnp.exp(z - m_new), axis=1, keepdims=True))
        m_sc[...] = m_new

    @pl.when(needs_mask)          # slow path: diagonal and/or padded columns
    def _():
        row_ids = row_start + lax.broadcasted_iota(jnp.int32, (tm, tn), 0)
        col_ids = col_start + lax.broadcasted_iota(jnp.int32, (tm, tn), 1)
        keep = (row_ids != col_ids) & (col_ids < n_valid)
        _online_lse_update(jnp.where(keep, raw, -jnp.inf))

    @pl.when(jnp.logical_not(needs_mask))   # fast path: no masks at all
    def _():
        _online_lse_update(raw)

    @pl.when(j == pl.num_programs(1) - 1)
    def _():
        lse = m_sc[...] + jnp.log(l_sc[...])               # logsumexp_{j!=i}(raw)
        mean_log_prob_pos = pos_ref[...] / cnt_ref[...] - lse
        out_ref[...] = (-loss_scale) * mean_log_prob_pos


def _pick_tiles(n, dp, feat_itemsize):
    """Largest (tm, tn) whose estimated VMEM footprint fits a v7x-safe budget."""
    budget = 36 * 1024 * 1024
    n128 = _round_up(n, 128)
    # >= 2 row tiles whenever n > 128 so the "parallel" row axis spans both
    # TensorCores on v7x; lane-facing sizes stay multiples of 128.
    tm_cap = min(n128, max(128, _round_up(-(-n // 2), 128)))
    tn_cap = n128
    candidates = ((512, 1024), (512, 512), (256, 512), (256, 256),
                  (128, 512), (128, 256), (128, 128))
    for tm_c, tn_c in candidates:
        tm = min(tm_c, tm_cap)
        tn = min(tn_c, tn_cap)
        fp = (2 * (tm + tn) * dp * feat_itemsize   # double-buffered feature tiles
              + 4 * tm * tn * 4)                   # ~4 live [tm, tn] f32 temporaries
        if fp <= budget:
            return tm, tn, fp
    tm, tn = min(128, tm_cap), min(128, tn_cap)
    return tm, tn, 2 * (tm + tn) * dp * feat_itemsize + 4 * tm * tn * 4


def supcon_loss(features, labels=None, mask=None,
                temperature=TEMPERATURE, base_temperature=BASE_TEMPERATURE):
    """JAX wrapper reproducing SupConLoss.forward (contrast_mode='all',
    contrast_sample='all')."""
    if features.ndim < 3:
        raise ValueError("`features` needs to be [bsz, n_views, ...]")
    if features.ndim > 3:
        features = features.reshape(features.shape[0], features.shape[1], -1)
    if labels is not None and mask is not None:
        raise ValueError("Cannot define both `labels` and `mask`")
    if mask is not None:
        # TODO(synk): arbitrary/asymmetric [bsz,bsz] contrast masks are not
        # encodable as per-anchor group statistics; labels / SimCLR paths only.
        raise NotImplementedError("explicit `mask` argument is not supported")

    bsz, n_views, dim = features.shape
    n = bsz * n_views
    if n < 2:
        raise ValueError("need at least 2 anchors (bsz * n_views >= 2)")

    inv_temp = 1.0 / float(temperature)
    loss_scale = float(temperature) / float(base_temperature)

    # --- per-sample group relation (tiny [B,B]) --------------------------------
    if labels is None:
        same_b = jnp.eye(bsz, dtype=jnp.float32)                  # SimCLR
    else:
        labels = jnp.asarray(labels).reshape(-1)
        if labels.shape[0] != bsz:
            raise ValueError("Num of labels does not match num of features")
        same_b = (labels[:, None] == labels[None, :]).astype(jnp.float32)

    feats32 = features.astype(jnp.float32)                        # [B, V, D]
    # contrast_feature = cat(unbind(features, dim=1), dim=0) -> [N, D] view-major
    cf = jnp.transpose(features, (1, 0, 2)).reshape(n, dim)

    # Positive counts: n_views * (#same-group samples) - 1 (self excluded).
    cnt_b = n_views * jnp.sum(same_b, axis=1) - 1.0                # [B]
    cnt_n = jnp.tile(cnt_b, n_views)                               # [N] view-major

    # Per-anchor positive-logit sum, computed algebraically (no [N,N] mask):
    #   sum_{j in pos(i)} raw_ij = inv_temp * (f_i . S_g(i) - ||f_i||^2)
    # where S_g = sum of features over the group (all views).
    fsum_sample = jnp.sum(feats32, axis=1)                         # [B, D]
    group_sum = same_b @ fsum_sample                               # [B, D]
    pos_bv = (jnp.einsum("bvd,bd->bv", feats32, group_sum)
              - jnp.sum(feats32 * feats32, axis=-1))               # [B, V]
    pos_n = inv_temp * jnp.transpose(pos_bv, (1, 0)).reshape(n)    # [N] view-major

    # --- tiling: Dp-aware, v7x-safe VMEM budget --------------------------------
    dp = _round_up(dim, 128)
    feat_itemsize = jnp.dtype(cf.dtype).itemsize
    tm, tn, fp_est = _pick_tiles(n, dp, feat_itemsize)
    row_tiles = -(-n // tm)
    col_tiles = -(-n // tn)
    np_ = max(row_tiles * tm, col_tiles * tn)      # pad so every block is in bounds

    cf_p = jnp.zeros((np_, dp), cf.dtype).at[:n, :dim].set(cf)
    cnt_p = jnp.ones((np_, 1), jnp.float32).at[:n, 0].set(cnt_n)   # padded rows: no 0/0
    pos_p = jnp.zeros((np_, 1), jnp.float32).at[:n, 0].set(pos_n)

    kernel = functools.partial(_supcon_kernel, inv_temp=inv_temp,
                               loss_scale=loss_scale, n_valid=n)

    vmem_limit = int(min(60 * 1024 * 1024,
                         max(32 * 1024 * 1024, fp_est + 16 * 1024 * 1024)))

    loss_rows = pl.pallas_call(
        kernel,
        out_shape=jax.ShapeDtypeStruct((np_, 1), jnp.float32),
        grid_spec=pltpu.PrefetchScalarGridSpec(
            num_scalar_prefetch=0,
            grid=(row_tiles, col_tiles),
            in_specs=[
                pl.BlockSpec((tm, dp), lambda i, j: (i, 0)),   # anchor feature rows
                pl.BlockSpec((tn, dp), lambda i, j: (j, 0)),   # contrast feature cols
                pl.BlockSpec((tm, 1), lambda i, j: (i, 0)),    # positive counts
                pl.BlockSpec((tm, 1), lambda i, j: (i, 0)),    # positive logit sums
            ],
            out_specs=pl.BlockSpec((tm, 1), lambda i, j: (i, 0)),
            scratch_shapes=[pltpu.VMEM((tm, 1), jnp.float32),
                            pltpu.VMEM((tm, 1), jnp.float32)],
        ),
        compiler_params=pltpu.CompilerParams(
            dimension_semantics=("parallel", "arbitrary"),
            vmem_limit_bytes=vmem_limit),
    )(cf_p, cf_p, cnt_p, pos_p)

    # loss.view(anchor_count, batch_size).mean() == mean over all N real anchors.
    return jnp.mean(loss_rows[:n, 0])


def supcon_loss_ref(features, labels=None,
                    temperature=TEMPERATURE, base_temperature=BASE_TEMPERATURE):
    """Pure-JAX reference (mirrors the PyTorch module) for verification."""
    bsz, n_views, dim = features.shape
    n = bsz * n_views
    if labels is None:
        base_mask = jnp.eye(bsz, dtype=jnp.float32)
    else:
        labels = jnp.asarray(labels).reshape(-1, 1)
        base_mask = (labels == labels.T).astype(jnp.float32)
    cf = jnp.transpose(features, (1, 0, 2)).reshape(n, dim).astype(jnp.float32)
    logits = cf @ cf.T / temperature
    logits = logits - jnp.max(logits, axis=1, keepdims=True)
    logits_mask = 1.0 - jnp.eye(n, dtype=jnp.float32)
    mask = jnp.tile(base_mask, (n_views, n_views)) * logits_mask
    exp_logits = jnp.exp(logits) * logits_mask
    log_prob = logits - jnp.log(jnp.sum(exp_logits, axis=1, keepdims=True))
    mlpp = jnp.sum(mask * log_prob, axis=1) / jnp.sum(mask, axis=1)
    loss = -(temperature / base_temperature) * mlpp
    return jnp.mean(loss)


if __name__ == "__main__":
    key = jax.random.PRNGKey(0)
    kf, kl = jax.random.split(key)

    B, V, D = 8, 2, 32
    features = jax.random.normal(kf, (B, V, D), dtype=jnp.float32)
    # L2-normalize features (standard SupCon usage)
    features = features / jnp.linalg.norm(features, axis=-1, keepdims=True)
    labels = jax.random.randint(kl, (B,), 0, 3)

    # supervised path (f32 features -> f32 matmul path)
    out = jax.block_until_ready(supcon_loss(features, labels=labels))
    ref = supcon_loss_ref(features, labels=labels)
    assert jnp.allclose(out, ref, atol=1e-4, rtol=1e-4), (out, ref)

    # unsupervised (SimCLR) path
    out2 = jax.block_until_ready(supcon_loss(features))
    ref2 = supcon_loss_ref(features)
    assert jnp.allclose(out2, ref2, atol=1e-4, rtol=1e-4), (out2, ref2)

    # bf16 features exercise the native-rate bf16 MXU path (looser tolerance)
    fb = features.astype(jnp.bfloat16)
    out3 = jax.block_until_ready(supcon_loss(fb, labels=labels))
    ref3 = supcon_loss_ref(fb.astype(jnp.float32), labels=labels)
    assert jnp.allclose(out3, ref3, atol=1e-1, rtol=1e-1), (out3, ref3)

    print("KERNEL_OK")
</pallas_src>

<mosaic_0001>
module attributes {stable_mosaic.version = 11 : i64} {
  func.func @_supcon_kernel(%arg0: i32, %arg1: i32, %arg2: memref<128x128xf32, #tpu.memory_space<vmem>>, %arg3: memref<128x128xf32, #tpu.memory_space<vmem>>, %arg4: memref<128x1xf32, #tpu.memory_space<vmem>>, %arg5: memref<128x1xf32, #tpu.memory_space<vmem>>, %arg6: memref<128x1xf32, #tpu.memory_space<vmem>>, %arg7: memref<128x1xf32, #tpu.memory_space<vmem>>, %arg8: memref<128x1xf32, #tpu.memory_space<vmem>>) attributes {dimension_semantics = [#tpu.dimension_semantics<parallel>, #tpu.dimension_semantics<arbitrary>], iteration_bounds = array<i64: 1, 1>, scalar_prefetch = 0 : i64, scratch_operands = 2 : i64, tpu.core_type = #tpu.core_type<tc>, window_params = [{transform_indices = @transform_0, window_bounds = array<i64: 128, 128>}, {transform_indices = @transform_1, window_bounds = array<i64: 128, 128>}, {transform_indices = @transform_2, window_bounds = array<i64: 128, 1>}, {transform_indices = @transform_3, window_bounds = array<i64: 128, 1>}, {transform_indices = @transform_4, window_bounds = array<i64: 128, 1>}]} {
    %c0_i32 = arith.constant 0 : i32
    %0 = arith.cmpi eq, %arg1, %c0_i32 : i32
    %1 = arith.extui %0 : i1 to i32
    %c0_i32_0 = arith.constant 0 : i32
    %2 = arith.cmpi ne, %1, %c0_i32_0 : i32
    scf.if %2 {
      %cst_13 = arith.constant 0xFF800000 : f32
      %26 = vector.broadcast %cst_13 : f32 to vector<128x1xf32>
      %c0_14 = arith.constant 0 : index
      %c0_15 = arith.constant 0 : index
      %27 = vector.load %arg7[%c0_14, %c0_15] : memref<128x1xf32, #tpu.memory_space<vmem>>, vector<128x1xf32>
      tpu.vector_store %arg7[%c0_14, %c0_15], %26 {strides = array<i32>} : memref<128x1xf32, #tpu.memory_space<vmem>>, vector<128x1xf32>,
      %cst_16 = arith.constant 0.000000e+00 : f32
      %28 = vector.broadcast %cst_16 : f32 to vector<128x1xf32>
      %c0_17 = arith.constant 0 : index
      %c0_18 = arith.constant 0 : index
      %29 = vector.load %arg8[%c0_17, %c0_18] : memref<128x1xf32, #tpu.memory_space<vmem>>, vector<128x1xf32>
      tpu.vector_store %arg8[%c0_17, %c0_18], %28 {strides = array<i32>} : memref<128x1xf32, #tpu.memory_space<vmem>>, vector<128x1xf32>,
    } else {
    }
    %c0 = arith.constant 0 : index
    %c0_1 = arith.constant 0 : index
    %3 = vector.load %arg2[%c0, %c0_1] : memref<128x128xf32, #tpu.memory_space<vmem>>, vector<128x128xf32>
    %cst = arith.constant 1.000000e+01 : f32
    %4 = vector.broadcast %cst : f32 to vector<128x128xf32>
    %5 = arith.mulf %3, %4 : vector<128x128xf32>
    %c0_2 = arith.constant 0 : index
    %c0_3 = arith.constant 0 : index
    %6 = vector.load %arg3[%c0_2, %c0_3] : memref<128x128xf32, #tpu.memory_space<vmem>>, vector<128x128xf32>
    %cst_4 = arith.constant dense<0.000000e+00> : vector<128x128xf32>
    %7 = tpu.matmul %5, %6, %cst_4 {dimension_numbers = #tpu.dot_dimension_numbers<[1], [1], [0], [0], [0, 0, 1, 0], [], []>} : vector<128x128xf32>, vector<128x128xf32>, vector<128x128xf32> -> vector<128x128xf32>
    %c128_i32 = arith.constant 128 : i32
    %8 = arith.muli %arg0, %c128_i32 : i32
    %c128_i32_5 = arith.constant 128 : i32
    %9 = arith.muli %arg1, %c128_i32_5 : i32
    %c128_i32_6 = arith.constant 128 : i32
    %10 = arith.addi %9, %c128_i32_6 : i32
    %11 = arith.cmpi slt, %8, %10 : i32
    %c128_i32_7 = arith.constant 128 : i32
    %12 = arith.addi %8, %c128_i32_7 : i32
    %13 = arith.cmpi slt, %9, %12 : i32
    %14 = arith.andi %11, %13 : i1
    %c128_i32_8 = arith.constant 128 : i32
    %15 = arith.addi %9, %c128_i32_8 : i32
    %c16_i32 = arith.constant 16 : i32
    %16 = arith.cmpi sgt, %15, %c16_i32 : i32
    %17 = arith.ori %14, %16 : i1
    %18 = arith.extui %17 : i1 to i32
    %c0_i32_9 = arith.constant 0 : i32
    %19 = arith.cmpi ne, %18, %c0_i32_9 : i32
    scf.if %19 {
      %26 = tpu.iota {dimensions = array<i32: 0>} : vector<128x128xi32>
      %27 = vector.broadcast %8 : i32 to vector<128x128xi32>
      %28 = arith.addi %27, %26 : vector<128x128xi32>
      %29 = tpu.iota {dimensions = array<i32: 1>} : vector<128x128xi32>
      %30 = vector.broadcast %9 : i32 to vector<128x128xi32>
      %31 = arith.addi %30, %29 : vector<128x128xi32>
      %32 = arith.cmpi ne, %28, %31 : vector<128x128xi32>
      %c16_i32_13 = arith.constant 16 : i32
      %33 = vector.broadcast %c16_i32_13 : i32 to vector<128x128xi32>
      %34 = arith.cmpi slt, %31, %33 : vector<128x128xi32>
      %35 = arith.andi %32, %34 : vector<128x128xi1>
      %cst_14 = arith.constant 0xFF800000 : f32
      %36 = vector.broadcast %cst_14 : f32 to vector<128x128xf32>
      %37 = arith.select %35, %7, %36 : vector<128x128xi1>, vector<128x128xf32>
      %c0_15 = arith.constant 0 : index
      %c0_16 = arith.constant 0 : index
      %38 = vector.load %arg7[%c0_15, %c0_16] : memref<128x1xf32, #tpu.memory_space<vmem>>, vector<128x1xf32>
      %cst_17 = arith.constant dense<0xFF800000> : vector<128xf32>
      %39 = vector.multi_reduction <maximumf>, %37, %cst_17 [1] : vector<128x128xf32> to vector<128xf32>
      %40 = vector.shape_cast %39 : vector<128xf32> to vector<128x1xf32>
      %41 = arith.maximumf %38, %40 : vector<128x1xf32>
      %42 = arith.subf %38, %41 : vector<128x1xf32>
      %43 = math.exp %42 : vector<128x1xf32>
      %c0_18 = arith.constant 0 : index
      %c0_19 = arith.constant 0 : index
      %44 = vector.load %arg8[%c0_18, %c0_19] : memref<128x1xf32, #tpu.memory_space<vmem>>, vector<128x1xf32>
      %45 = arith.mulf %43, %44 : vector<128x1xf32>
      %46 = vector.broadcast %41 : vector<128x1xf32> to vector<128x128xf32>
      %47 = arith.subf %37, %46 : vector<128x128xf32>
      %48 = math.exp %47 : vector<128x128xf32>
      %cst_20 = arith.constant dense<0.000000e+00> : vector<128xf32>
      %49 = vector.multi_reduction <add>, %48, %cst_20 [1] : vector<128x128xf32> to vector<128xf32>
      %50 = vector.shape_cast %49 : vector<128xf32> to vector<128x1xf32>
      %51 = arith.addf %45, %50 : vector<128x1xf32>
      %c0_21 = arith.constant 0 : index
      %c0_22 = arith.constant 0 : index
      %52 = vector.load %arg8[%c0_21, %c0_22] : memref<128x1xf32, #tpu.memory_space<vmem>>, vector<128x1xf32>
      tpu.vector_store %arg8[%c0_21, %c0_22], %51 {strides = array<i32>} : memref<128x1xf32, #tpu.memory_space<vmem>>, vector<128x1xf32>,
      %c0_23 = arith.constant 0 : index
      %c0_24 = arith.constant 0 : index
      %53 = vector.load %arg7[%c0_23, %c0_24] : memref<128x1xf32, #tpu.memory_space<vmem>>, vector<128x1xf32>
      tpu.vector_store %arg7[%c0_23, %c0_24], %41 {strides = array<i32>} : memref<128x1xf32, #tpu.memory_space<vmem>>, vector<128x1xf32>,
    } else {
    }
    %true = arith.constant true
    %20 = arith.xori %17, %true : i1
    %21 = arith.extui %20 : i1 to i32
    %c0_i32_10 = arith.constant 0 : i32
    %22 = arith.cmpi ne, %21, %c0_i32_10 : i32
    scf.if %22 {
      %c0_13 = arith.constant 0 : index
      %c0_14 = arith.constant 0 : index
      %26 = vector.load %arg7[%c0_13, %c0_14] : memref<128x1xf32, #tpu.memory_space<vmem>>, vector<128x1xf32>
      %cst_15 = arith.constant dense<0xFF800000> : vector<128xf32>
      %27 = vector.multi_reduction <maximumf>, %7, %cst_15 [1] : vector<128x128xf32> to vector<128xf32>
      %28 = vector.shape_cast %27 : vector<128xf32> to vector<128x1xf32>
      %29 = arith.maximumf %26, %28 : vector<128x1xf32>
      %30 = arith.subf %26, %29 : vector<128x1xf32>
      %31 = math.exp %30 : vector<128x1xf32>
      %c0_16 = arith.constant 0 : index
      %c0_17 = arith.constant 0 : index
      %32 = vector.load %arg8[%c0_16, %c0_17] : memref<128x1xf32, #tpu.memory_space<vmem>>, vector<128x1xf32>
      %33 = arith.mulf %31, %32 : vector<128x1xf32>
      %34 = vector.broadcast %29 : vector<128x1xf32> to vector<128x128xf32>
      %35 = arith.subf %7, %34 : vector<128x128xf32>
      %36 = math.exp %35 : vector<128x128xf32>
      %cst_18 = arith.constant dense<0.000000e+00> : vector<128xf32>
      %37 = vector.multi_reduction <add>, %36, %cst_18 [1] : vector<128x128xf32> to vector<128xf32>
      %38 = vector.shape_cast %37 : vector<128xf32> to vector<128x1xf32>
      %39 = arith.addf %33, %38 : vector<128x1xf32>
      %c0_19 = arith.constant 0 : index
      %c0_20 = arith.constant 0 : index
      %40 = vector.load %arg8[%c0_19, %c0_20] : memref<128x1xf32, #tpu.memory_space<vmem>>, vector<128x1xf32>
      tpu.vector_store %arg8[%c0_19, %c0_20], %39 {strides = array<i32>} : memref<128x1xf32, #tpu.memory_space<vmem>>, vector<128x1xf32>,
      %c0_21 = arith.constant 0 : index
      %c0_22 = arith.constant 0 : index
      %41 = vector.load %arg7[%c0_21, %c0_22] : memref<128x1xf32, #tpu.memory_space<vmem>>, vector<128x1xf32>
      tpu.vector_store %arg7[%c0_21, %c0_22], %29 {strides = array<i32>} : memref<128x1xf32, #tpu.memory_space<vmem>>, vector<128x1xf32>,
    } else {
    }
    %c0_i32_11 = arith.constant 0 : i32
    %23 = arith.cmpi eq, %arg1, %c0_i32_11 : i32
    %24 = arith.extui %23 : i1 to i32
    %c0_i32_12 = arith.constant 0 : i32
    %25 = arith.cmpi ne, %24, %c0_i32_12 : i32
    scf.if %25 {
      %c0_13 = arith.constant 0 : index
      %c0_14 = arith.constant 0 : index
      %26 = vector.load %arg7[%c0_13, %c0_14] : memref<128x1xf32, #tpu.memory_space<vmem>>, vector<128x1xf32>
      %c0_15 = arith.constant 0 : index
      %c0_16 = arith.constant 0 : index
      %27 = vector.load %arg8[%c0_15, %c0_16] : memref<128x1xf32, #tpu.memory_space<vmem>>, vector<128x1xf32>
      %28 = math.log %27 : vector<128x1xf32>
      %29 = arith.addf %26, %28 : vector<128x1xf32>
      %c0_17 = arith.constant 0 : index
      %c0_18 = arith.constant 0 : index
      %30 = vector.load %arg5[%c0_17, %c0_18] : memref<128x1xf32, #tpu.memory_space<vmem>>, vector<128x1xf32>
      %c0_19 = arith.constant 0 : index
      %c0_20 = arith.constant 0 : index
      %31 = vector.load %arg4[%c0_19, %c0_20] : memref<128x1xf32, #tpu.memory_space<vmem>>, vector<128x1xf32>
      %32 = arith.divf %30, %31 : vector<128x1xf32>
      %33 = arith.subf %32, %29 : vector<128x1xf32>
      %cst_21 = arith.constant -1.000000e+00 : f32
      %34 = vector.broadcast %cst_21 : f32 to vector<128x1xf32>
      %35 = arith.mulf %34, %33 : vector<128x1xf32>
      %c0_22 = arith.constant 0 : index
      %c0_23 = arith.constant 0 : index
      %36 = vector.load %arg6[%c0_22, %c0_23] : memref<128x1xf32, #tpu.memory_space<vmem>>, vector<128x1xf32>
      tpu.vector_store %arg6[%c0_22, %c0_23], %35 {strides = array<i32>} : memref<128x1xf32, #tpu.memory_space<vmem>>, vector<128x1xf32>,
    } else {
    }
    return
  }
  func.func @transform_0(%arg0: i32, %arg1: i32) -> (i32, i32) {
    %c0_i32 = arith.constant 0 : i32
    %c0_i32_0 = arith.constant 0 : i32
    return %arg0, %c0_i32 : i32, i32
  }
  func.func @transform_1(%arg0: i32, %arg1: i32) -> (i32, i32) {
    %c0_i32 = arith.constant 0 : i32
    %c0_i32_0 = arith.constant 0 : i32
    return %arg1, %c0_i32 : i32, i32
  }
  func.func @transform_2(%arg0: i32, %arg1: i32) -> (i32, i32) {
    %c0_i32 = arith.constant 0 : i32
    %c0_i32_0 = arith.constant 0 : i32
    return %arg0, %c0_i32 : i32, i32
  }
  func.func @transform_3(%arg0: i32, %arg1: i32) -> (i32, i32) {
    %c0_i32 = arith.constant 0 : i32
    %c0_i32_0 = arith.constant 0 : i32
    return %arg0, %c0_i32 : i32, i32
  }
  func.func @transform_4(%arg0: i32, %arg1: i32) -> (i32, i32) {
    %c0_i32 = arith.constant 0 : i32
    %c0_i32_0 = arith.constant 0 : i32
    return %arg0, %c0_i32 : i32, i32
  }
}

</mosaic_0001>

<llo_original>
// kernel: tpu_custom_call.1
$region0: #{tpu_custom_call.1}
  #allocation0 [shape = 'u32[]', space=smem, size = 0x4, offset = 0x4, fixed_abs, tag = 'smem constant byte address 0x4 - core index']
  #allocation1 [shape = 'u32[144,128]{1,0:T(1,128)}', space=vmem, size = 0x12000, scoped, tag = 'internal scratch']
  #allocation2 [shape = 'f32[128,1]{1,0:T(8,128)}', space=vmem, size = 0x10000, scoped, tag = 'scratch operand']
  #allocation3 [shape = 'f32[128,1]{1,0:T(8,128)}', space=vmem, size = 0x10000, scoped, tag = 'scratch operand']
  %s0 = inlined_call_operand.vmem [shape: f32[128,128], index: 0, kind: input, shape index: {}]
  %s1 = inlined_call_operand.vmem [shape: f32[128,128], index: 1, kind: input, shape index: {}]
  %s2 = inlined_call_operand.vmem [shape: f32[128,1], index: 2, kind: input, shape index: {}]
  %s3 = inlined_call_operand.vmem [shape: f32[128,1], index: 3, kind: input, shape index: {}]
  %s4 = inlined_call_operand.vmem [shape: f32[128,1], index: 4, kind: output, shape index: {}]
  %s5 = sld [smem:[#allocation0]]
  $region42: #{tpu_custom_call.1} parent=0
    _
  %s7 = ssub.s32 1, %s5
  %s8 = scalar_select 0, %s7, %s5
  // Predicated region
  $region2: #{tpu_custom_call.1} parent=0 // pred_check
    _
  $region3: #{tpu_custom_call.1} parent=0 // pred_check_branch
    %10 = sbr.rel (0) target = $region5
  $region4: #{tpu_custom_call.1} parent=0 // pred_region
    _
  $region5: #{tpu_custom_call.1} parent=0 // pred_fallthru
    _
  // Predicated region
  $region6: #{tpu_custom_call.1} parent=0 // pred_check
    _
  $region7: #{tpu_custom_call.1} parent=0 // pred_check_branch
    %12 = sbr.rel (0) target = $region9
  $region8: #{tpu_custom_call.1} parent=0 // pred_region
    _
  $region9: #{tpu_custom_call.1} parent=0 // pred_fallthru
    _
  // Predicated region
  $region10: #{tpu_custom_call.1} parent=0 // pred_check
    _
  $region11: #{tpu_custom_call.1} parent=0 // pred_check_branch
    %14 = sbr.rel (0) target = $region13
  $region12: #{tpu_custom_call.1} parent=0 // pred_region
    _
  $region13: #{tpu_custom_call.1} parent=0 // pred_fallthru
    _
  // Predicated region
  $region14: #{tpu_custom_call.1} parent=0 // pred_check
    _
  $region15: #{tpu_custom_call.1} parent=0 // pred_check_branch
    %16 = sbr.rel (0) target = $region17
  $region16: #{tpu_custom_call.1} parent=0 // pred_region
    _
  $region17: #{tpu_custom_call.1} parent=0 // pred_fallthru
    _
  %p17 = scmp.eq.s32.totalorder 0, 0
  // Predicated region
  $region18: #{tpu_custom_call.1} parent=0 // pred_check
    %p18 = pneg %p17
  $region19: #{tpu_custom_call.1} parent=0 // pred_check_branch
    %20 = sbr.rel (%p18) target = $region21
  $region20: #{tpu_custom_call.1} parent=0 // pred_region
    %vm21 = vcmask 7168
    %22 = vst.msk [vmem:[#allocation2] sm:$0xff] %vm21, -inf
    %23 = vst.msk [vmem:[#allocation2 + $0x8] sm:$0xff] %vm21, -inf
    %24 = vst.msk [vmem:[#allocation2 + $0x10] sm:$0xff] %vm21, -inf
    %25 = vst.msk [vmem:[#allocation2 + $0x18] sm:$0xff] %vm21, -inf
    %26 = vst.msk [vmem:[#allocation2 + $0x20] sm:$0xff] %vm21, -inf
    %27 = vst.msk [vmem:[#allocation2 + $0x28] sm:$0xff] %vm21, -inf
    %28 = vst.msk [vmem:[#allocation2 + $0x30] sm:$0xff] %vm21, -inf
    %29 = vst.msk [vmem:[#allocation2 + $0x38] sm:$0xff] %vm21, -inf
    %30 = vst.msk [vmem:[#allocation2 + $0x40] sm:$0xff] %vm21, -inf
    %31 = vst.msk [vmem:[#allocation2 + $0x48] sm:$0xff] %vm21, -inf
    %32 = vst.msk [vmem:[#allocation2 + $0x50] sm:$0xff] %vm21, -inf
    %33 = vst.msk [vmem:[#allocation2 + $0x58] sm:$0xff] %vm21, -inf
    %34 = vst.msk [vmem:[#allocation2 + $0x60] sm:$0xff] %vm21, -inf
    %35 = vst.msk [vmem:[#allocation2 + $0x68] sm:$0xff] %vm21, -inf
    %36 = vst.msk [vmem:[#allocation2 + $0x70] sm:$0xff] %vm21, -inf
    %37 = vst.msk [vmem:[#allocation2 + $0x78] sm:$0xff] %vm21, -inf
    %38 = vst.msk [vmem:[#allocation3] sm:$0xff] %vm21, 0.0
    %39 = vst.msk [vmem:[#allocation3 + $0x8] sm:$0xff] %vm21, 0.0
    %40 = vst.msk [vmem:[#allocation3 + $0x10] sm:$0xff] %vm21, 0.0
    %41 = vst.msk [vmem:[#allocation3 + $0x18] sm:$0xff] %vm21, 0.0
    %42 = vst.msk [vmem:[#allocation3 + $0x20] sm:$0xff] %vm21, 0.0
    %43 = vst.msk [vmem:[#allocation3 + $0x28] sm:$0xff] %vm21, 0.0
    %44 = vst.msk [vmem:[#allocation3 + $0x30] sm:$0xff] %vm21, 0.0
    %45 = vst.msk [vmem:[#allocation3 + $0x38] sm:$0xff] %vm21, 0.0
    %46 = vst.msk [vmem:[#allocation3 + $0x40] sm:$0xff] %vm21, 0.0
    %47 = vst.msk [vmem:[#allocation3 + $0x48] sm:$0xff] %vm21, 0.0
    %48 = vst.msk [vmem:[#allocation3 + $0x50] sm:$0xff] %vm21, 0.0
    %49 = vst.msk [vmem:[#allocation3 + $0x58] sm:$0xff] %vm21, 0.0
    %50 = vst.msk [vmem:[#allocation3 + $0x60] sm:$0xff] %vm21, 0.0
    %51 = vst.msk [vmem:[#allocation3 + $0x68] sm:$0xff] %vm21, 0.0
    %52 = vst.msk [vmem:[#allocation3 + $0x70] sm:$0xff] %vm21, 0.0
    %53 = vst.msk [vmem:[#allocation3 + $0x78] sm:$0xff] %vm21, 0.0
  $region21: #{tpu_custom_call.1} parent=0 // pred_fallthru
    _
  %v54 = vld [vmem:[%s0] sm:$0xff]
  %v55 = vld [vmem:[%s0 + $0x8] sm:$0xff]
  %v56 = vld [vmem:[%s0 + $0x10] sm:$0xff]
  %v57 = vld [vmem:[%s0 + $0x18] sm:$0xff]
  %v58 = vld [vmem:[%s0 + $0x20] sm:$0xff]
  %v59 = vld [vmem:[%s0 + $0x28] sm:$0xff]
  %v60 = vld [vmem:[%s0 + $0x30] sm:$0xff]
  %v61 = vld [vmem:[%s0 + $0x38] sm:$0xff]
  %v62 = vld [vmem:[%s0 + $0x40] sm:$0xff]
  %v63 = vld [vmem:[%s0 + $0x48] sm:$0xff]
  %v64 = vld [vmem:[%s0 + $0x50] sm:$0xff]
  %v65 = vld [vmem:[%s0 + $0x58] sm:$0xff]
  %v66 = vld [vmem:[%s0 + $0x60] sm:$0xff]
  %v67 = vld [vmem:[%s0 + $0x68] sm:$0xff]
  %v68 = vld [vmem:[%s0 + $0x70] sm:$0xff]
  %v69 = vld [vmem:[%s0 + $0x78] sm:$0xff]
  %v70 = vmul.f32 %v54, 10.0
  %v71 = vmul.f32 %v55, 10.0
  %v72 = vmul.f32 %v56, 10.0
  %v73 = vmul.f32 %v57, 10.0
  %v74 = vmul.f32 %v58, 10.0
  %v75 = vmul.f32 %v59, 10.0
  %v76 = vmul.f32 %v60, 10.0
  %v77 = vmul.f32 %v61, 10.0
  %v78 = vmul.f32 %v62, 10.0
  %v79 = vmul.f32 %v63, 10.0
  %v80 = vmul.f32 %v64, 10.0
  %v81 = vmul.f32 %v65, 10.0
  %v82 = vmul.f32 %v66, 10.0
  %v83 = vmul.f32 %v67, 10.0
  %v84 = vmul.f32 %v68, 10.0
  %v85 = vmul.f32 %v69, 10.0
  %v86 = vld [vmem:[%s1] sm:$0xff]
  %v87 = vld [vmem:[%s1 + $0x8] sm:$0xff]
  %v88 = vld [vmem:[%s1 + $0x10] sm:$0xff]
  %v89 = vld [vmem:[%s1 + $0x18] sm:$0xff]
  %v90 = vld [vmem:[%s1 + $0x20] sm:$0xff]
  %v91 = vld [vmem:[%s1 + $0x28] sm:$0xff]
  %v92 = vld [vmem:[%s1 + $0x30] sm:$0xff]
  %v93 = vld [vmem:[%s1 + $0x38] sm:$0xff]
  %v94 = vld [vmem:[%s1 + $0x40] sm:$0xff]
  %v95 = vld [vmem:[%s1 + $0x48] sm:$0xff]
  %v96 = vld [vmem:[%s1 + $0x50] sm:$0xff]
  %v97 = vld [vmem:[%s1 + $0x58] sm:$0xff]
  %v98 = vld [vmem:[%s1 + $0x60] sm:$0xff]
  %v99 = vld [vmem:[%s1 + $0x68] sm:$0xff]
  %v100 = vld [vmem:[%s1 + $0x70] sm:$0xff]
  %v101 = vld [vmem:[%s1 + $0x78] sm:$0xff]
  %102 = vmatprep.subr.mxu0 0.0
  %103 = vmatpush1.xpose.msra.mxu0 %v86
  %104 = vmatprep.subr.mxu0 0.0
  %105 = vmatpush1.xpose.msra.mxu0 %v87
  %106 = vmatprep.subr.mxu0 0.0
  %107 = vmatpush1.xpose.msra.mxu0 %v88
  %108 = vmatprep.subr.mxu0 0.0
  %109 = vmatpush1.xpose.msra.mxu0 %v89
  %110 = vmatprep.subr.mxu0 0.0
  %111 = vmatpush1.xpose.msra.mxu0 %v90
  %112 = vmatprep.subr.mxu0 0.0
  %113 = vmatpush1.xpose.msra.mxu0 %v91
  %114 = vmatprep.subr.mxu0 0.0
  %115 = vmatpush1.xpose.msra.mxu0 %v92
  %116 = vmatprep.subr.mxu0 0.0
  %117 = vmatpush1.xpose.msra.mxu0 %v93
  %118 = vmatprep.subr.mxu0 0.0
  %119 = vmatpush1.xpose.msra.mxu0 %v94
  %120 = vmatprep.subr.mxu0 0.0
  %121 = vmatpush1.xpose.msra.mxu0 %v95
  %122 = vmatprep.subr.mxu0 0.0
  %123 = vmatpush1.xpose.msra.mxu0 %v96
  %124 = vmatprep.subr.mxu0 0.0
  %125 = vmatpush1.xpose.msra.mxu0 %v97
  %126 = vmatprep.subr.mxu0 0.0
  %127 = vmatpush1.xpose.msra.mxu0 %v98
  %128 = vmatprep.subr.mxu0 0.0
  %129 = vmatpush1.xpose.msra.mxu0 %v99
  %130 = vmatprep.subr.mxu0 0.0
  %131 = vmatpush1.xpose.msra.mxu0 %v100
  %132 = vmatprep.subr.mxu0 0.0
  %133 = vmatpush1.xpose.msra.mxu0 %v101
  %134 = vmatprep.subr.mxu0 0.0
  %135 = vmatpush1.xpose.msra.mxu0 0.0
  %136 = vmatprep.subr.mxu0 0.0
  %137 = vmatpush1.xpose.msra.mxu0 0.0
  %138 = vmatprep.subr.mxu0 0.0
  %139 = vmatpush1.xpose.msra.mxu0 0.0
  %140 = vmatprep.subr.mxu0 0.0
  %141 = vmatpush1.xpose.msra.mxu0 0.0
  %142 = vmatprep.subr.mxu0 0.0
  %143 = vmatpush1.xpose.msra.mxu0 0.0
  %144 = vmatprep.subr.mxu0 0.0
  %145 = vmatpush1.xpose.msra.mxu0 0.0
  %146 = vmatprep.subr.mxu0 0.0
  %147 = vmatpush1.xpose.msra.mxu0 0.0
  %148 = vmatprep.subr.mxu0 0.0
  %149 = vmatpush1.xpose.msra.mxu0 0.0
  %150 = vmatprep.subr.mxu0 0.0
  %151 = vmatpush1.xpose.msra.mxu0 0.0
  %152 = vmatprep.subr.mxu0 0.0
  %153 = vmatpush1.xpose.msra.mxu0 0.0
  %154 = vmatprep.subr.mxu0 0.0
  %155 = vmatpush1.xpose.msra.mxu0 0.0
  %156 = vmatprep.subr.mxu0 0.0
  %157 = vmatpush1.xpose.msra.mxu0 0.0
  %158 = vmatprep.subr.mxu0 0.0
  %159 = vmatpush1.xpose.msra.mxu0 0.0
  %160 = vmatprep.subr.mxu0 0.0
  %161 = vmatpush1.xpose.msra.mxu0 0.0
  %162 = vmatprep.subr.mxu0 0.0
  %163 = vmatpush1.xpose.msra.mxu0 0.0
  %164 = vmatprep.subr.mxu0 0.0
  %165 = vmatpush1.xpose.msra.mxu0 0.0
  %166 = vmatprep.mubr.f32.mxu0 0.0
  %167 = vmatmul.mubr.f32.gmra.mrb[0].mxu0 %v70
  %v168 = vpop.f32.mrb[0].mxu0
  %v169 = vadd.f32 0.0, %v168
  %v170 = vpop.f32.mrb[0].mxu0
  %171 = vmatprep.mubr.f32.mxu0 0.0
  %172 = vmatmul.mubr.f32.gmra.mrb[0].mxu0 %v71
  %v173 = vpop.f32.mrb[0].mxu0
  %v174 = vadd.f32 0.0, %v173
  %v175 = vpop.f32.mrb[0].mxu0
  %176 = vmatprep.mubr.f32.mxu0 0.0
  %177 = vmatmul.mubr.f32.gmra.mrb[0].mxu0 %v72
  %v178 = vpop.f32.mrb[0].mxu0
  %v179 = vadd.f32 0.0, %v178
  %v180 = vpop.f32.mrb[0].mxu0
  %181 = vmatprep.mubr.f32.mxu0 0.0
  %182 = vmatmul.mubr.f32.gmra.mrb[0].mxu0 %v73
  %v183 = vpop.f32.mrb[0].mxu0
  %v184 = vadd.f32 0.0, %v183
  %v185 = vpop.f32.mrb[0].mxu0
  %186 = vmatprep.mubr.f32.mxu0 0.0
  %187 = vmatmul.mubr.f32.gmra.mrb[0].mxu0 %v74
  %v188 = vpop.f32.mrb[0].mxu0
  %v189 = vadd.f32 0.0, %v188
  %v190 = vpop.f32.mrb[0].mxu0
  %191 = vmatprep.mubr.f32.mxu0 0.0
  %192 = vmatmul.mubr.f32.gmra.mrb[0].mxu0 %v75
  %v193 = vpop.f32.mrb[0].mxu0
  %v194 = vadd.f32 0.0, %v193
  %v195 = vpop.f32.mrb[0].mxu0
  %196 = vmatprep.mubr.f32.mxu0 0.0
  %197 = vmatmul.mubr.f32.gmra.mrb[0].mxu0 %v76
  %v198 = vpop.f32.mrb[0].mxu0
  %v199 = vadd.f32 0.0, %v198
  %v200 = vpop.f32.mrb[0].mxu0
  %201 = vmatprep.mubr.f32.mxu0 0.0
  %202 = vmatmul.mubr.f32.gmra.mrb[0].mxu0 %v77
  %v203 = vpop.f32.mrb[0].mxu0
  %v204 = vadd.f32 0.0, %v203
  %v205 = vpop.f32.mrb[0].mxu0
  %206 = vmatprep.mubr.f32.mxu0 0.0
  %207 = vmatmul.mubr.f32.gmra.mrb[0].mxu0 %v78
  %v208 = vpop.f32.mrb[0].mxu0
  %v209 = vadd.f32 0.0, %v208
  %v210 = vpop.f32.mrb[0].mxu0
  %211 = vmatprep.mubr.f32.mxu0 0.0
  %212 = vmatmul.mubr.f32.gmra.mrb[0].mxu0 %v79
  %v213 = vpop.f32.mrb[0].mxu0
  %v214 = vadd.f32 0.0, %v213
  %v215 = vpop.f32.mrb[0].mxu0
  %216 = vmatprep.mubr.f32.mxu0 0.0
  %217 = vmatmul.mubr.f32.gmra.mrb[0].mxu0 %v80
  %v218 = vpop.f32.mrb[0].mxu0
  %v219 = vadd.f32 0.0, %v218
  %v220 = vpop.f32.mrb[0].mxu0
  %221 = vmatprep.mubr.f32.mxu0 0.0
  %222 = vmatmul.mubr.f32.gmra.mrb[0].mxu0 %v81
  %v223 = vpop.f32.mrb[0].mxu0
  %v224 = vadd.f32 0.0, %v223
  %v225 = vpop.f32.mrb[0].mxu0
  %226 = vmatprep.mubr.f32.mxu0 0.0
  %227 = vmatmul.mubr.f32.gmra.mrb[0].mxu0 %v82
  %v228 = vpop.f32.mrb[0].mxu0
  %v229 = vadd.f32 0.0, %v228
  %v230 = vpop.f32.mrb[0].mxu0
  %231 = vmatprep.mubr.f32.mxu0 0.0
  %232 = vmatmul.mubr.f32.gmra.mrb[0].mxu0 %v83
  %v233 = vpop.f32.mrb[0].mxu0
  %v234 = vadd.f32 0.0, %v233
  %v235 = vpop.f32.mrb[0].mxu0
  %236 = vmatprep.mubr.f32.mxu0 0.0
  %237 = vmatmul.mubr.f32.gmra.mrb[0].mxu0 %v84
  %v238 = vpop.f32.mrb[0].mxu0
  %v239 = vadd.f32 0.0, %v238
  %v240 = vpop.f32.mrb[0].mxu0
  %241 = vmatprep.mubr.f32.mxu0 0.0
  %242 = vmatmul.mubr.f32.gmra.mrb[0].mxu0 %v85
  %v243 = vpop.f32.mrb[0].mxu0
  %v244 = vadd.f32 0.0, %v243
  %v245 = vpop.f32.mrb[0].mxu0
  %246 = vdwg.mxu0
  %s247 = smul.u32 0, 128
  %s248 = smul.u32 0, 128
  %s249 = sadd.s32 %s248, 128
  %p250 = scmp.lt.s32.totalorder %s247, %s249
  %s251 = sadd.s32 %s247, 128
  %p252 = scmp.lt.s32.totalorder %s248, %s251
  %p253 = pnand %p250, %p252
  %p254 = pneg %p253
  %p255 = scmp.gt.s32.totalorder %s249, 16
  %p256 = por %p254, %p255
  // Predicated region
  $region22: #{tpu_custom_call.1} parent=0 // pred_check
    %p257 = pneg %p256
  $region23: #{tpu_custom_call.1} parent=0 // pred_check_branch
    %259 = sbr.rel (%p257) target = $region25
  $region24: #{tpu_custom_call.1} parent=0 // pred_region
    %v260 = vlaneseq
    %v261 = vshrl.u32 %v260, 7
    %v262 = vadd.s32 %v261, 8
    %v263 = vadd.s32 %v261, 16
    %v264 = vadd.s32 %v261, 24
    %v265 = vadd.s32 %v261, 32
    %v266 = vadd.s32 %v261, 40
    %v267 = vadd.s32 %v261, 48
    %v268 = vadd.s32 %v261, 56
    %v269 = vadd.s32 %v261, 64
    %v270 = vadd.s32 %v261, 72
    %v271 = vadd.s32 %v261, 80
    %v272 = vadd.s32 %v261, 88
    %v273 = vadd.s32 %v261, 96
    %v274 = vadd.s32 %v261, 104
    %v275 = vadd.s32 %v261, 112
    %v276 = vadd.s32 %v261, 120
    %v277 = vstv %s247
    %v278 = vadd.s32 %v277, %v261
    %v279 = vadd.s32 %v277, %v262
    %v280 = vadd.s32 %v277, %v263
    %v281 = vadd.s32 %v277, %v264
    %v282 = vadd.s32 %v277, %v265
    %v283 = vadd.s32 %v277, %v266
    %v284 = vadd.s32 %v277, %v267
    %v285 = vadd.s32 %v277, %v268
    %v286 = vadd.s32 %v277, %v269
    %v287 = vadd.s32 %v277, %v270
    %v288 = vadd.s32 %v277, %v271
    %v289 = vadd.s32 %v277, %v272
    %v290 = vadd.s32 %v277, %v273
    %v291 = vadd.s32 %v277, %v274
    %v292 = vadd.s32 %v277, %v275
    %v293 = vadd.s32 %v277, %v276
    %v294 = vlaneseq
    %v295 = vand.u32 %v294, 127
    %v296 = vstv %s248
    %v297 = vadd.s32 %v296, %v295
    %vm298 = vcmp.ne.s32.totalorder %v278, %v297
    %vm299 = vcmp.ne.s32.totalorder %v279, %v297
    %vm300 = vcmp.ne.s32.totalorder %v280, %v297
    %vm301 = vcmp.ne.s32.totalorder %v281, %v297
    %vm302 = vcmp.ne.s32.totalorder %v282, %v297
    %vm303 = vcmp.ne.s32.totalorder %v283, %v297
    %vm304 = vcmp.ne.s32.totalorder %v284, %v297
    %vm305 = vcmp.ne.s32.totalorder %v285, %v297
    %vm306 = vcmp.ne.s32.totalorder %v286, %v297
    %vm307 = vcmp.ne.s32.totalorder %v287, %v297
    %vm308 = vcmp.ne.s32.totalorder %v288, %v297
    %vm309 = vcmp.ne.s32.totalorder %v289, %v297
    %vm310 = vcmp.ne.s32.totalorder %v290, %v297
    %vm311 = vcmp.ne.s32.totalorder %v291, %v297
    %vm312 = vcmp.ne.s32.totalorder %v292, %v297
    %vm313 = vcmp.ne.s32.totalorder %v293, %v297
    %vm314 = vcmp.lt.s32.totalorder %v297, 16
    %vm315 = vmand %vm298, %vm314
    %vm316 = vmand %vm299, %vm314
    %vm317 = vmand %vm300, %vm314
    %vm318 = vmand %vm301, %vm314
    %vm319 = vmand %vm302, %vm314
    %vm320 = vmand %vm303, %vm314
    %vm321 = vmand %vm304, %vm314
    %vm322 = vmand %vm305, %vm314
    %vm323 = vmand %vm306, %vm314
    %vm324 = vmand %vm307, %vm314
    %vm325 = vmand %vm308, %vm314
    %vm326 = vmand %vm309, %vm314
    %vm327 = vmand %vm310, %vm314
    %vm328 = vmand %vm311, %vm314
    %vm329 = vmand %vm312, %vm314
    %vm330 = vmand %vm313, %vm314
    %v331 = vsel %vm315, %v169, -inf
    %v332 = vsel %vm316, %v174, -inf
    %v333 = vsel %vm317, %v179, -inf
    %v334 = vsel %vm318, %v184, -inf
    %v335 = vsel %vm319, %v189, -inf
    %v336 = vsel %vm320, %v194, -inf
    %v337 = vsel %vm321, %v199, -inf
    %v338 = vsel %vm322, %v204, -inf
    %v339 = vsel %vm323, %v209, -inf
    %v340 = vsel %vm324, %v214, -inf
    %v341 = vsel %vm325, %v219, -inf
    %v342 = vsel %vm326, %v224, -inf
    %v343 = vsel %vm327, %v229, -inf
    %v344 = vsel %vm328, %v234, -inf
    %v345 = vsel %vm329, %v239, -inf
    %v346 = vsel %vm330, %v244, -inf
    %v347 = vld [vmem:[#allocation2] sm:$0xff]
    %v348 = vld [vmem:[#allocation2 + $0x8] sm:$0xff]
    %v349 = vld [vmem:[#allocation2 + $0x10] sm:$0xff]
    %v350 = vld [vmem:[#allocation2 + $0x18] sm:$0xff]
    %v351 = vld [vmem:[#allocation2 + $0x20] sm:$0xff]
    %v352 = vld [vmem:[#allocation2 + $0x28] sm:$0xff]
    %v353 = vld [vmem:[#allocation2 + $0x30] sm:$0xff]
    %v354 = vld [vmem:[#allocation2 + $0x38] sm:$0xff]
    %v355 = vld [vmem:[#allocation2 + $0x40] sm:$0xff]
    %v356 = vld [vmem:[#allocation2 + $0x48] sm:$0xff]
    %v357 = vld [vmem:[#allocation2 + $0x50] sm:$0xff]
    %v358 = vld [vmem:[#allocation2 + $0x58] sm:$0xff]
    %v359 = vld [vmem:[#allocation2 + $0x60] sm:$0xff]
    %v360 = vld [vmem:[#allocation2 + $0x68] sm:$0xff]
    %v361 = vld [vmem:[#allocation2 + $0x70] sm:$0xff]
    %v362 = vld [vmem:[#allocation2 + $0x78] sm:$0xff]
    %363 = vmax.xlane.f32.xlu0 %v331
    %v364 = vpop.xlane.xlu0 %363
    %365 = vmax.xlane.f32.xlu0 %v332
    %v366 = vpop.xlane.xlu0 %365
    %367 = vmax.xlane.f32.xlu0 %v333
    %v368 = vpop.xlane.xlu0 %367
    %369 = vmax.xlane.f32.xlu0 %v334
    %v370 = vpop.xlane.xlu0 %369
    %371 = vmax.xlane.f32.xlu0 %v335
    %v372 = vpop.xlane.xlu0 %371
    %373 = vmax.xlane.f32.xlu0 %v336
    %v374 = vpop.xlane.xlu0 %373
    %375 = vmax.xlane.f32.xlu0 %v337
    %v376 = vpop.xlane.xlu0 %375
    %377 = vmax.xlane.f32.xlu0 %v338
    %v378 = vpop.xlane.xlu0 %377
    %379 = vmax.xlane.f32.xlu0 %v339
    %v380 = vpop.xlane.xlu0 %379
    %381 = vmax.xlane.f32.xlu0 %v340
    %v382 = vpop.xlane.xlu0 %381
    %383 = vmax.xlane.f32.xlu0 %v341
    %v384 = vpop.xlane.xlu0 %383
    %385 = vmax.xlane.f32.xlu0 %v342
    %v386 = vpop.xlane.xlu0 %385
    %387 = vmax.xlane.f32.xlu0 %v343
    %v388 = vpop.xlane.xlu0 %387
    %389 = vmax.xlane.f32.xlu0 %v344
    %v390 = vpop.xlane.xlu0 %389
    %391 = vmax.xlane.f32.xlu0 %v345
    %v392 = vpop.xlane.xlu0 %391
    %393 = vmax.xlane.f32.xlu0 %v346
    %v394 = vpop.xlane.xlu0 %393
    %v395 = vmax.f32 %v347, %v364
    %v396 = vmax.f32 %v348, %v366
    %v397 = vmax.f32 %v349, %v368
    %v398 = vmax.f32 %v350, %v370
    %v399 = vmax.f32 %v351, %v372
    %v400 = vmax.f32 %v352, %v374
    %v401 = vmax.f32 %v353, %v376
    %v402 = vmax.f32 %v354, %v378
    %v403 = vmax.f32 %v355, %v380
    %v404 = vmax.f32 %v356, %v382
    %v405 = vmax.f32 %v357, %v384
    %v406 = vmax.f32 %v358, %v386
    %v407 = vmax.f32 %v359, %v388
    %v408 = vmax.f32 %v360, %v390
    %v409 = vmax.f32 %v361, %v392
    %v410 = vmax.f32 %v362, %v394
    %v411 = vsub.f32 %v347, %v395
    %v412 = vsub.f32 %v348, %v396
    %v413 = vsub.f32 %v349, %v397
    %v414 = vsub.f32 %v350, %v398
    %v415 = vsub.f32 %v351, %v399
    %v416 = vsub.f32 %v352, %v400
    %v417 = vsub.f32 %v353, %v401
    %v418 = vsub.f32 %v354, %v402
    %v419 = vsub.f32 %v355, %v403
    %v420 = vsub.f32 %v356, %v404
    %v421 = vsub.f32 %v357, %v405
    %v422 = vsub.f32 %v358, %v406
    %v423 = vsub.f32 %v359, %v407
    %v424 = vsub.f32 %v360, %v408
    %v425 = vsub.f32 %v361, %v409
    %v426 = vsub.f32 %v362, %v410
    %v427 = vmul.f32 %v411, 1.442695
    %v428 = vpow.pop %v427
    %v429 = vmul.f32 %v412, 1.442695
    %v430 = vpow.pop %v429
    %v431 = vmul.f32 %v413, 1.442695
    %v432 = vpow.pop %v431
    %v433 = vmul.f32 %v414, 1.442695
    %v434 = vpow.pop %v433
    %v435 = vmul.f32 %v415, 1.442695
    %v436 = vpow.pop %v435
    %v437 = vmul.f32 %v416, 1.442695
    %v438 = vpow.pop %v437
    %v439 = vmul.f32 %v417, 1.442695
    %v440 = vpow.pop %v439
    %v441 = vmul.f32 %v418, 1.442695
    %v442 = vpow.pop %v441
    %v443 = vmul.f32 %v419, 1.442695
    %v444 = vpow.pop %v443
    %v445 = vmul.f32 %v420, 1.442695
    %v446 = vpow.pop %v445
    %v447 = vmul.f32 %v421, 1.442695
    %v448 = vpow.pop %v447
    %v449 = vmul.f32 %v422, 1.442695
    %v450 = vpow.pop %v449
    %v451 = vmul.f32 %v423, 1.442695
    %v452 = vpow.pop %v451
    %v453 = vmul.f32 %v424, 1.442695
    %v454 = vpow.pop %v453
    %v455 = vmul.f32 %v425, 1.442695
    %v456 = vpow.pop %v455
    %v457 = vmul.f32 %v426, 1.442695
    %v458 = vpow.pop %v457
    %v459 = vld [vmem:[#allocation3] sm:$0xff]
    %v460 = vld [vmem:[#allocation3 + $0x8] sm:$0xff]
    %v461 = vld [vmem:[#allocation3 + $0x10] sm:$0xff]
    %v462 = vld [vmem:[#allocation3 + $0x18] sm:$0xff]
    %v463 = vld [vmem:[#allocation3 + $0x20] sm:$0xff]
    %v464 = vld [vmem:[#allocation3 + $0x28] sm:$0xff]
    %v465 = vld [vmem:[#allocation3 + $0x30] sm:$0xff]
    %v466 = vld [vmem:[#allocation3 + $0x38] sm:$0xff]
    %v467 = vld [vmem:[#allocation3 + $0x40] sm:$0xff]
    %v468 = vld [vmem:[#allocation3 + $0x48] sm:$0xff]
    %v469 = vld [vmem:[#allocation3 + $0x50] sm:$0xff]
    %v470 = vld [vmem:[#allocation3 + $0x58] sm:$0xff]
    %v471 = vld [vmem:[#allocation3 + $0x60] sm:$0xff]
    %v472 = vld [vmem:[#allocation3 + $0x68] sm:$0xff]
    %v473 = vld [vmem:[#allocation3 + $0x70] sm:$0xff]
    %v474 = vld [vmem:[#allocation3 + $0x78] sm:$0xff]
    %v475 = vmul.f32 %v428, %v459
    %v476 = vmul.f32 %v430, %v460
    %v477 = vmul.f32 %v432, %v461
    %v478 = vmul.f32 %v434, %v462
    %v479 = vmul.f32 %v436, %v463
    %v480 = vmul.f32 %v438, %v464
    %v481 = vmul.f32 %v440, %v465
    %v482 = vmul.f32 %v442, %v466
    %v483 = vmul.f32 %v444, %v467
    %v484 = vmul.f32 %v446, %v468
    %v485 = vmul.f32 %v448, %v469
    %v486 = vmul.f32 %v450, %v470
    %v487 = vmul.f32 %v452, %v471
    %v488 = vmul.f32 %v454, %v472
    %v489 = vmul.f32 %v456, %v473
    %v490 = vmul.f32 %v458, %v474
    %492 = vset.pattern.permute.xlu0 0
    %493 = vperm.xlu0 %492, %v395
    %v494 = vpop.permute.xlu0 %493
    %497 = vset.pattern.permute.xlu0 0
    %498 = vperm.xlu0 %497, %v396
    %v499 = vpop.permute.xlu0 %498
    %502 = vset.pattern.permute.xlu0 0
    %503 = vperm.xlu0 %502, %v397
    %v504 = vpop.permute.xlu0 %503
    %507 = vset.pattern.permute.xlu0 0
    %508 = vperm.xlu0 %507, %v398
    %v509 = vpop.permute.xlu0 %508
    %512 = vset.pattern.permute.xlu0 0
    %513 = vperm.xlu0 %512, %v399
    %v514 = vpop.permute.xlu0 %513
    %517 = vset.pattern.permute.xlu0 0
    %518 = vperm.xlu0 %517, %v400
    %v519 = vpop.permute.xlu0 %518
    %522 = vset.pattern.permute.xlu0 0
    %523 = vperm.xlu0 %522, %v401
    %v524 = vpop.permute.xlu0 %523
    %527 = vset.pattern.permute.xlu0 0
    %528 = vperm.xlu0 %527, %v402
    %v529 = vpop.permute.xlu0 %528
    %532 = vset.pattern.permute.xlu0 0
    %533 = vperm.xlu0 %532, %v403
    %v534 = vpop.permute.xlu0 %533
    %537 = vset.pattern.permute.xlu0 0
    %538 = vperm.xlu0 %537, %v404
    %v539 = vpop.permute.xlu0 %538
    %542 = vset.pattern.permute.xlu0 0
    %543 = vperm.xlu0 %542, %v405
    %v544 = vpop.permute.xlu0 %543
    %547 = vset.pattern.permute.xlu0 0
    %548 = vperm.xlu0 %547, %v406
    %v549 = vpop.permute.xlu0 %548
    %552 = vset.pattern.permute.xlu0 0
    %553 = vperm.xlu0 %552, %v407
    %v554 = vpop.permute.xlu0 %553
    %557 = vset.pattern.permute.xlu0 0
    %558 = vperm.xlu0 %557, %v408
    %v559 = vpop.permute.xlu0 %558
    %562 = vset.pattern.permute.xlu0 0
    %563 = vperm.xlu0 %562, %v409
    %v564 = vpop.permute.xlu0 %563
    %567 = vset.pattern.permute.xlu0 0
    %568 = vperm.xlu0 %567, %v410
    %v569 = vpop.permute.xlu0 %568
    %v571 = vsub.f32 %v331, %v494
    %v572 = vsub.f32 %v332, %v499
    %v573 = vsub.f32 %v333, %v504
    %v574 = vsub.f32 %v334, %v509
    %v575 = vsub.f32 %v335, %v514
    %v576 = vsub.f32 %v336, %v519
    %v577 = vsub.f32 %v337, %v524
    %v578 = vsub.f32 %v338, %v529
    %v579 = vsub.f32 %v339, %v534
    %v580 = vsub.f32 %v340, %v539
    %v581 = vsub.f32 %v341, %v544
    %v582 = vsub.f32 %v342, %v549
    %v583 = vsub.f32 %v343, %v554
    %v584 = vsub.f32 %v344, %v559
    %v585 = vsub.f32 %v345, %v564
    %v586 = vsub.f32 %v346, %v569
    %v587 = vmul.f32 %v571, 1.442695
    %v588 = vpow.pop %v587
    %v589 = vmul.f32 %v572, 1.442695
    %v590 = vpow.pop %v589
    %v591 = vmul.f32 %v573, 1.442695
    %v592 = vpow.pop %v591
    %v593 = vmul.f32 %v574, 1.442695
    %v594 = vpow.pop %v593
    %v595 = vmul.f32 %v575, 1.442695
    %v596 = vpow.pop %v595
    %v597 = vmul.f32 %v576, 1.442695
    %v598 = vpow.pop %v597
    %v599 = vmul.f32 %v577, 1.442695
    %v600 = vpow.pop %v599
    %v601 = vmul.f32 %v578, 1.442695
    %v602 = vpow.pop %v601
    %v603 = vmul.f32 %v579, 1.442695
    %v604 = vpow.pop %v603
    %v605 = vmul.f32 %v580, 1.442695
    %v606 = vpow.pop %v605
    %v607 = vmul.f32 %v581, 1.442695
    %v608 = vpow.pop %v607
    %v609 = vmul.f32 %v582, 1.442695
    %v610 = vpow.pop %v609
    %v611 = vmul.f32 %v583, 1.442695
    %v612 = vpow.pop %v611
    %v613 = vmul.f32 %v584, 1.442695
    %v614 = vpow.pop %v613
    %v615 = vmul.f32 %v585, 1.442695
    %v616 = vpow.pop %v615
    %v617 = vmul.f32 %v586, 1.442695
    %v618 = vpow.pop %v617
    %619 = vadd.xlane.f32.xlu0 %v588
    %v620 = vpop.xlane.xlu0 %619
    %621 = vadd.xlane.f32.xlu0 %v590
    %v622 = vpop.xlane.xlu0 %621
    %623 = vadd.xlane.f32.xlu0 %v592
    %v624 = vpop.xlane.xlu0 %623
    %625 = vadd.xlane.f32.xlu0 %v594
    %v626 = vpop.xlane.xlu0 %625
    %627 = vadd.xlane.f32.xlu0 %v596
    %v628 = vpop.xlane.xlu0 %627
    %629 = vadd.xlane.f32.xlu0 %v598
    %v630 = vpop.xlane.xlu0 %629
    %631 = vadd.xlane.f32.xlu0 %v600
    %v632 = vpop.xlane.xlu0 %631
    %633 = vadd.xlane.f32.xlu0 %v602
    %v634 = vpop.xlane.xlu0 %633
    %635 = vadd.xlane.f32.xlu0 %v604
    %v636 = vpop.xlane.xlu0 %635
    %637 = vadd.xlane.f32.xlu0 %v606
    %v638 = vpop.xlane.xlu0 %637
    %639 = vadd.xlane.f32.xlu0 %v608
    %v640 = vpop.xlane.xlu0 %639
    %641 = vadd.xlane.f32.xlu0 %v610
    %v642 = vpop.xlane.xlu0 %641
    %643 = vadd.xlane.f32.xlu0 %v612
    %v644 = vpop.xlane.xlu0 %643
    %645 = vadd.xlane.f32.xlu0 %v614
    %v646 = vpop.xlane.xlu0 %645
    %647 = vadd.xlane.f32.xlu0 %v616
    %v648 = vpop.xlane.xlu0 %647
    %649 = vadd.xlane.f32.xlu0 %v618
    %v650 = vpop.xlane.xlu0 %649
    %v651 = vadd.f32 %v475, %v620
    %v652 = vadd.f32 %v476, %v622
    %v653 = vadd.f32 %v477, %v624
    %v654 = vadd.f32 %v478, %v626
    %v655 = vadd.f32 %v479, %v628
    %v656 = vadd.f32 %v480, %v630
    %v657 = vadd.f32 %v481, %v632
    %v658 = vadd.f32 %v482, %v634
    %v659 = vadd.f32 %v483, %v636
    %v660 = vadd.f32 %v484, %v638
    %v661 = vadd.f32 %v485, %v640
    %v662 = vadd.f32 %v486, %v642
    %v663 = vadd.f32 %v487, %v644
    %v664 = vadd.f32 %v488, %v646
    %v665 = vadd.f32 %v489, %v648
    %v666 = vadd.f32 %v490, %v650
    %vm667 = vcmask 7168
    %668 = vst.msk [vmem:[#allocation3] sm:$0xff] %vm667, %v651
    %669 = vst.msk [vmem:[#allocation3 + $0x8] sm:$0xff] %vm667, %v652
    %670 = vst.msk [vmem:[#allocation3 + $0x10] sm:$0xff] %vm667, %v653
    %671 = vst.msk [vmem:[#allocation3 + $0x18] sm:$0xff] %vm667, %v654
    %672 = vst.msk [vmem:[#allocation3 + $0x20] sm:$0xff] %vm667, %v655
    %673 = vst.msk [vmem:[#allocation3 + $0x28] sm:$0xff] %vm667, %v656
    %674 = vst.msk [vmem:[#allocation3 + $0x30] sm:$0xff] %vm667, %v657
    %675 = vst.msk [vmem:[#allocation3 + $0x38] sm:$0xff] %vm667, %v658
    %676 = vst.msk [vmem:[#allocation3 + $0x40] sm:$0xff] %vm667, %v659
    %677 = vst.msk [vmem:[#allocation3 + $0x48] sm:$0xff] %vm667, %v660
    %678 = vst.msk [vmem:[#allocation3 + $0x50] sm:$0xff] %vm667, %v661
    %679 = vst.msk [vmem:[#allocation3 + $0x58] sm:$0xff] %vm667, %v662
    %680 = vst.msk [vmem:[#allocation3 + $0x60] sm:$0xff] %vm667, %v663
    %681 = vst.msk [vmem:[#allocation3 + $0x68] sm:$0xff] %vm667, %v664
    %682 = vst.msk [vmem:[#allocation3 + $0x70] sm:$0xff] %vm667, %v665
    %683 = vst.msk [vmem:[#allocation3 + $0x78] sm:$0xff] %vm667, %v666
    %684 = vst.msk [vmem:[#allocation2] sm:$0xff] %vm667, %v395
    %685 = vst.msk [vmem:[#allocation2 + $0x8] sm:$0xff] %vm667, %v396
    %686 = vst.msk [vmem:[#allocation2 + $0x10] sm:$0xff] %vm667, %v397
    %687 = vst.msk [vmem:[#allocation2 + $0x18] sm:$0xff] %vm667, %v398
    %688 = vst.msk [vmem:[#allocation2 + $0x20] sm:$0xff] %vm667, %v399
    %689 = vst.msk [vmem:[#allocation2 + $0x28] sm:$0xff] %vm667, %v400
    %690 = vst.msk [vmem:[#allocation2 + $0x30] sm:$0xff] %vm667, %v401
    %691 = vst.msk [vmem:[#allocation2 + $0x38] sm:$0xff] %vm667, %v402
    %692 = vst.msk [vmem:[#allocation2 + $0x40] sm:$0xff] %vm667, %v403
    %693 = vst.msk [vmem:[#allocation2 + $0x48] sm:$0xff] %vm667, %v404
    %694 = vst.msk [vmem:[#allocation2 + $0x50] sm:$0xff] %vm667, %v405
    %695 = vst.msk [vmem:[#allocation2 + $0x58] sm:$0xff] %vm667, %v406
    %696 = vst.msk [vmem:[#allocation2 + $0x60] sm:$0xff] %vm667, %v407
    %697 = vst.msk [vmem:[#allocation2 + $0x68] sm:$0xff] %vm667, %v408
    %698 = vst.msk [vmem:[#allocation2 + $0x70] sm:$0xff] %vm667, %v409
    %699 = vst.msk [vmem:[#allocation2 + $0x78] sm:$0xff] %vm667, %v410
  $region25: #{tpu_custom_call.1} parent=0 // pred_fallthru
    _
  %p700 = pneg %p256
  // Predicated region
  $region26: #{tpu_custom_call.1} parent=0 // pred_check
    _
  $region27: #{tpu_custom_call.1} parent=0 // pred_check_branch
    %702 = sbr.rel (%p256) target = $region29
  $region28: #{tpu_custom_call.1} parent=0 // pred_region
    %v703 = vld [vmem:[#allocation2] sm:$0xff]
    %v704 = vld [vmem:[#allocation2 + $0x8] sm:$0xff]
    %v705 = vld [vmem:[#allocation2 + $0x10] sm:$0xff]
    %v706 = vld [vmem:[#allocation2 + $0x18] sm:$0xff]
    %v707 = vld [vmem:[#allocation2 + $0x20] sm:$0xff]
    %v708 = vld [vmem:[#allocation2 + $0x28] sm:$0xff]
    %v709 = vld [vmem:[#allocation2 + $0x30] sm:$0xff]
    %v710 = vld [vmem:[#allocation2 + $0x38] sm:$0xff]
    %v711 = vld [vmem:[#allocation2 + $0x40] sm:$0xff]
    %v712 = vld [vmem:[#allocation2 + $0x48] sm:$0xff]
    %v713 = vld [vmem:[#allocation2 + $0x50] sm:$0xff]
    %v714 = vld [vmem:[#allocation2 + $0x58] sm:$0xff]
    %v715 = vld [vmem:[#allocation2 + $0x60] sm:$0xff]
    %v716 = vld [vmem:[#allocation2 + $0x68] sm:$0xff]
    %v717 = vld [vmem:[#allocation2 + $0x70] sm:$0xff]
    %v718 = vld [vmem:[#allocation2 + $0x78] sm:$0xff]
    %719 = vmax.xlane.f32.xlu0 %v169
    %v720 = vpop.xlane.xlu0 %719
    %721 = vmax.xlane.f32.xlu0 %v174
    %v722 = vpop.xlane.xlu0 %721
    %723 = vmax.xlane.f32.xlu0 %v179
    %v724 = vpop.xlane.xlu0 %723
    %725 = vmax.xlane.f32.xlu0 %v184
    %v726 = vpop.xlane.xlu0 %725
    %727 = vmax.xlane.f32.xlu0 %v189
    %v728 = vpop.xlane.xlu0 %727
    %729 = vmax.xlane.f32.xlu0 %v194
    %v730 = vpop.xlane.xlu0 %729
    %731 = vmax.xlane.f32.xlu0 %v199
    %v732 = vpop.xlane.xlu0 %731
    %733 = vmax.xlane.f32.xlu0 %v204
    %v734 = vpop.xlane.xlu0 %733
    %735 = vmax.xlane.f32.xlu0 %v209
    %v736 = vpop.xlane.xlu0 %735
    %737 = vmax.xlane.f32.xlu0 %v214
    %v738 = vpop.xlane.xlu0 %737
    %739 = vmax.xlane.f32.xlu0 %v219
    %v740 = vpop.xlane.xlu0 %739
    %741 = vmax.xlane.f32.xlu0 %v224
    %v742 = vpop.xlane.xlu0 %741
    %743 = vmax.xlane.f32.xlu0 %v229
    %v744 = vpop.xlane.xlu0 %743
    %745 = vmax.xlane.f32.xlu0 %v234
    %v746 = vpop.xlane.xlu0 %745
    %747 = vmax.xlane.f32.xlu0 %v239
    %v748 = vpop.xlane.xlu0 %747
    %749 = vmax.xlane.f32.xlu0 %v244
    %v750 = vpop.xlane.xlu0 %749
    %v751 = vmax.f32 %v703, %v720
    %v752 = vmax.f32 %v704, %v722
    %v753 = vmax.f32 %v705, %v724
    %v754 = vmax.f32 %v706, %v726
    %v755 = vmax.f32 %v707, %v728
    %v756 = vmax.f32 %v708, %v730
    %v757 = vmax.f32 %v709, %v732
    %v758 = vmax.f32 %v710, %v734
    %v759 = vmax.f32 %v711, %v736
    %v760 = vmax.f32 %v712, %v738
    %v761 = vmax.f32 %v713, %v740
    %v762 = vmax.f32 %v714, %v742
    %v763 = vmax.f32 %v715, %v744
    %v764 = vmax.f32 %v716, %v746
    %v765 = vmax.f32 %v717, %v748
    %v766 = vmax.f32 %v718, %v750
    %v767 = vsub.f32 %v703, %v751
    %v768 = vsub.f32 %v704, %v752
    %v769 = vsub.f32 %v705, %v753
    %v770 = vsub.f32 %v706, %v754
    %v771 = vsub.f32 %v707, %v755
    %v772 = vsub.f32 %v708, %v756
    %v773 = vsub.f32 %v709, %v757
    %v774 = vsub.f32 %v710, %v758
    %v775 = vsub.f32 %v711, %v759
    %v776 = vsub.f32 %v712, %v760
    %v777 = vsub.f32 %v713, %v761
    %v778 = vsub.f32 %v714, %v762
    %v779 = vsub.f32 %v715, %v763
    %v780 = vsub.f32 %v716, %v764
    %v781 = vsub.f32 %v717, %v765
    %v782 = vsub.f32 %v718, %v766
    %v783 = vmul.f32 %v767, 1.442695
    %v784 = vpow.pop %v783
    %v785 = vmul.f32 %v768, 1.442695
    %v786 = vpow.pop %v785
    %v787 = vmul.f32 %v769, 1.442695
    %v788 = vpow.pop %v787
    %v789 = vmul.f32 %v770, 1.442695
    %v790 = vpow.pop %v789
    %v791 = vmul.f32 %v771, 1.442695
    %v792 = vpow.pop %v791
    %v793 = vmul.f32 %v772, 1.442695
    %v794 = vpow.pop %v793
    %v795 = vmul.f32 %v773, 1.442695
    %v796 = vpow.pop %v795
    %v797 = vmul.f32 %v774, 1.442695
    %v798 = vpow.pop %v797
    %v799 = vmul.f32 %v775, 1.442695
    %v800 = vpow.pop %v799
    %v801 = vmul.f32 %v776, 1.442695
    %v802 = vpow.pop %v801
    %v803 = vmul.f32 %v777, 1.442695
    %v804 = vpow.pop %v803
    %v805 = vmul.f32 %v778, 1.442695
    %v806 = vpow.pop %v805
    %v807 = vmul.f32 %v779, 1.442695
    %v808 = vpow.pop %v807
    %v809 = vmul.f32 %v780, 1.442695
    %v810 = vpow.pop %v809
    %v811 = vmul.f32 %v781, 1.442695
    %v812 = vpow.pop %v811
    %v813 = vmul.f32 %v782, 1.442695
    %v814 = vpow.pop %v813
    %v815 = vld [vmem:[#allocation3] sm:$0xff]
    %v816 = vld [vmem:[#allocation3 + $0x8] sm:$0xff]
    %v817 = vld [vmem:[#allocation3 + $0x10] sm:$0xff]
    %v818 = vld [vmem:[#allocation3 + $0x18] sm:$0xff]
    %v819 = vld [vmem:[#allocation3 + $0x20] sm:$0xff]
    %v820 = vld [vmem:[#allocation3 + $0x28] sm:$0xff]
    %v821 = vld [vmem:[#allocation3 + $0x30] sm:$0xff]
    %v822 = vld [vmem:[#allocation3 + $0x38] sm:$0xff]
    %v823 = vld [vmem:[#allocation3 + $0x40] sm:$0xff]
    %v824 = vld [vmem:[#allocation3 + $0x48] sm:$0xff]
    %v825 = vld [vmem:[#allocation3 + $0x50] sm:$0xff]
    %v826 = vld [vmem:[#allocation3 + $0x58] sm:$0xff]
    %v827 = vld [vmem:[#allocation3 + $0x60] sm:$0xff]
    %v828 = vld [vmem:[#allocation3 + $0x68] sm:$0xff]
    %v829 = vld [vmem:[#allocation3 + $0x70] sm:$0xff]
    %v830 = vld [vmem:[#allocation3 + $0x78] sm:$0xff]
    %v831 = vmul.f32 %v784, %v815
    %v832 = vmul.f32 %v786, %v816
    %v833 = vmul.f32 %v788, %v817
    %v834 = vmul.f32 %v790, %v818
    %v835 = vmul.f32 %v792, %v819
    %v836 = vmul.f32 %v794, %v820
    %v837 = vmul.f32 %v796, %v821
    %v838 = vmul.f32 %v798, %v822
    %v839 = vmul.f32 %v800, %v823
    %v840 = vmul.f32 %v802, %v824
    %v841 = vmul.f32 %v804, %v825
    %v842 = vmul.f32 %v806, %v826
    %v843 = vmul.f32 %v808, %v827
    %v844 = vmul.f32 %v810, %v828
    %v845 = vmul.f32 %v812, %v829
    %v846 = vmul.f32 %v814, %v830
    %848 = vset.pattern.permute.xlu0 0
    %849 = vperm.xlu0 %848, %v751
    %v850 = vpop.permute.xlu0 %849
    %853 = vset.pattern.permute.xlu0 0
    %854 = vperm.xlu0 %853, %v752
    %v855 = vpop.permute.xlu0 %854
    %858 = vset.pattern.permute.xlu0 0
    %859 = vperm.xlu0 %858, %v753
    %v860 = vpop.permute.xlu0 %859
    %863 = vset.pattern.permute.xlu0 0
    %864 = vperm.xlu0 %863, %v754
    %v865 = vpop.permute.xlu0 %864
    %868 = vset.pattern.permute.xlu0 0
    %869 = vperm.xlu0 %868, %v755
    %v870 = vpop.permute.xlu0 %869
    %873 = vset.pattern.permute.xlu0 0
    %874 = vperm.xlu0 %873, %v756
    %v875 = vpop.permute.xlu0 %874
    %878 = vset.pattern.permute.xlu0 0
    %879 = vperm.xlu0 %878, %v757
    %v880 = vpop.permute.xlu0 %879
    %883 = vset.pattern.permute.xlu0 0
    %884 = vperm.xlu0 %883, %v758
    %v885 = vpop.permute.xlu0 %884
    %888 = vset.pattern.permute.xlu0 0
    %889 = vperm.xlu0 %888, %v759
    %v890 = vpop.permute.xlu0 %889
    %893 = vset.pattern.permute.xlu0 0
    %894 = vperm.xlu0 %893, %v760
    %v895 = vpop.permute.xlu0 %894
    %898 = vset.pattern.permute.xlu0 0
    %899 = vperm.xlu0 %898, %v761
    %v900 = vpop.permute.xlu0 %899
    %903 = vset.pattern.permute.xlu0 0
    %904 = vperm.xlu0 %903, %v762
    %v905 = vpop.permute.xlu0 %904
    %908 = vset.pattern.permute.xlu0 0
    %909 = vperm.xlu0 %908, %v763
    %v910 = vpop.permute.xlu0 %909
    %913 = vset.pattern.permute.xlu0 0
    %914 = vperm.xlu0 %913, %v764
    %v915 = vpop.permute.xlu0 %914
    %918 = vset.pattern.permute.xlu0 0
    %919 = vperm.xlu0 %918, %v765
    %v920 = vpop.permute.xlu0 %919
    %923 = vset.pattern.permute.xlu0 0
    %924 = vperm.xlu0 %923, %v766
    %v925 = vpop.permute.xlu0 %924
    %v927 = vsub.f32 %v169, %v850
    %v928 = vsub.f32 %v174, %v855
    %v929 = vsub.f32 %v179, %v860
    %v930 = vsub.f32 %v184, %v865
    %v931 = vsub.f32 %v189, %v870
    %v932 = vsub.f32 %v194, %v875
    %v933 = vsub.f32 %v199, %v880
    %v934 = vsub.f32 %v204, %v885
    %v935 = vsub.f32 %v209, %v890
    %v936 = vsub.f32 %v214, %v895
    %v937 = vsub.f32 %v219, %v900
    %v938 = vsub.f32 %v224, %v905
    %v939 = vsub.f32 %v229, %v910
    %v940 = vsub.f32 %v234, %v915
    %v941 = vsub.f32 %v239, %v920
    %v942 = vsub.f32 %v244, %v925
    %v943 = vmul.f32 %v927, 1.442695
    %v944 = vpow.pop %v943
    %v945 = vmul.f32 %v928, 1.442695
    %v946 = vpow.pop %v945
    %v947 = vmul.f32 %v929, 1.442695
    %v948 = vpow.pop %v947
    %v949 = vmul.f32 %v930, 1.442695
    %v950 = vpow.pop %v949
    %v951 = vmul.f32 %v931, 1.442695
    %v952 = vpow.pop %v951
    %v953 = vmul.f32 %v932, 1.442695
    %v954 = vpow.pop %v953
    %v955 = vmul.f32 %v933, 1.442695
    %v956 = vpow.pop %v955
    %v957 = vmul.f32 %v934, 1.442695
    %v958 = vpow.pop %v957
    %v959 = vmul.f32 %v935, 1.442695
    %v960 = vpow.pop %v959
    %v961 = vmul.f32 %v936, 1.442695
    %v962 = vpow.pop %v961
    %v963 = vmul.f32 %v937, 1.442695
    %v964 = vpow.pop %v963
    %v965 = vmul.f32 %v938, 1.442695
    %v966 = vpow.pop %v965
    %v967 = vmul.f32 %v939, 1.442695
    %v968 = vpow.pop %v967
    %v969 = vmul.f32 %v940, 1.442695
    %v970 = vpow.pop %v969
    %v971 = vmul.f32 %v941, 1.442695
    %v972 = vpow.pop %v971
    %v973 = vmul.f32 %v942, 1.442695
    %v974 = vpow.pop %v973
    %975 = vadd.xlane.f32.xlu0 %v944
    %v976 = vpop.xlane.xlu0 %975
    %977 = vadd.xlane.f32.xlu0 %v946
    %v978 = vpop.xlane.xlu0 %977
    %979 = vadd.xlane.f32.xlu0 %v948
    %v980 = vpop.xlane.xlu0 %979
    %981 = vadd.xlane.f32.xlu0 %v950
    %v982 = vpop.xlane.xlu0 %981
    %983 = vadd.xlane.f32.xlu0 %v952
    %v984 = vpop.xlane.xlu0 %983
    %985 = vadd.xlane.f32.xlu0 %v954
    %v986 = vpop.xlane.xlu0 %985
    %987 = vadd.xlane.f32.xlu0 %v956
    %v988 = vpop.xlane.xlu0 %987
    %989 = vadd.xlane.f32.xlu0 %v958
    %v990 = vpop.xlane.xlu0 %989
    %991 = vadd.xlane.f32.xlu0 %v960
    %v992 = vpop.xlane.xlu0 %991
    %993 = vadd.xlane.f32.xlu0 %v962
    %v994 = vpop.xlane.xlu0 %993
    %995 = vadd.xlane.f32.xlu0 %v964
    %v996 = vpop.xlane.xlu0 %995
    %997 = vadd.xlane.f32.xlu0 %v966
    %v998 = vpop.xlane.xlu0 %997
    %999 = vadd.xlane.f32.xlu0 %v968
    %v1000 = vpop.xlane.xlu0 %999
    %1001 = vadd.xlane.f32.xlu0 %v970
    %v1002 = vpop.xlane.xlu0 %1001
    %1003 = vadd.xlane.f32.xlu0 %v972
    %v1004 = vpop.xlane.xlu0 %1003
    %1005 = vadd.xlane.f32.xlu0 %v974
    %v1006 = vpop.xlane.xlu0 %1005
    %v1007 = vadd.f32 %v831, %v976
    %v1008 = vadd.f32 %v832, %v978
    %v1009 = vadd.f32 %v833, %v980
    %v1010 = vadd.f32 %v834, %v982
    %v1011 = vadd.f32 %v835, %v984
    %v1012 = vadd.f32 %v836, %v986
    %v1013 = vadd.f32 %v837, %v988
    %v1014 = vadd.f32 %v838, %v990
    %v1015 = vadd.f32 %v839, %v992
    %v1016 = vadd.f32 %v840, %v994
    %v1017 = vadd.f32 %v841, %v996
    %v1018 = vadd.f32 %v842, %v998
    %v1019 = vadd.f32 %v843, %v1000
    %v1020 = vadd.f32 %v844, %v1002
    %v1021 = vadd.f32 %v845, %v1004
    %v1022 = vadd.f32 %v846, %v1006
    %vm1023 = vcmask 7168
    %1024 = vst.msk [vmem:[#allocation3] sm:$0xff] %vm1023, %v1007
    %1025 = vst.msk [vmem:[#allocation3 + $0x8] sm:$0xff] %vm1023, %v1008
    %1026 = vst.msk [vmem:[#allocation3 + $0x10] sm:$0xff] %vm1023, %v1009
    %1027 = vst.msk [vmem:[#allocation3 + $0x18] sm:$0xff] %vm1023, %v1010
    %1028 = vst.msk [vmem:[#allocation3 + $0x20] sm:$0xff] %vm1023, %v1011
    %1029 = vst.msk [vmem:[#allocation3 + $0x28] sm:$0xff] %vm1023, %v1012
    %1030 = vst.msk [vmem:[#allocation3 + $0x30] sm:$0xff] %vm1023, %v1013
    %1031 = vst.msk [vmem:[#allocation3 + $0x38] sm:$0xff] %vm1023, %v1014
    %1032 = vst.msk [vmem:[#allocation3 + $0x40] sm:$0xff] %vm1023, %v1015
    %1033 = vst.msk [vmem:[#allocation3 + $0x48] sm:$0xff] %vm1023, %v1016
    %1034 = vst.msk [vmem:[#allocation3 + $0x50] sm:$0xff] %vm1023, %v1017
    %1035 = vst.msk [vmem:[#allocation3 + $0x58] sm:$0xff] %vm1023, %v1018
    %1036 = vst.msk [vmem:[#allocation3 + $0x60] sm:$0xff] %vm1023, %v1019
    %1037 = vst.msk [vmem:[#allocation3 + $0x68] sm:$0xff] %vm1023, %v1020
    %1038 = vst.msk [vmem:[#allocation3 + $0x70] sm:$0xff] %vm1023, %v1021
    %1039 = vst.msk [vmem:[#allocation3 + $0x78] sm:$0xff] %vm1023, %v1022
    %1040 = vst.msk [vmem:[#allocation2] sm:$0xff] %vm1023, %v751
    %1041 = vst.msk [vmem:[#allocation2 + $0x8] sm:$0xff] %vm1023, %v752
    %1042 = vst.msk [vmem:[#allocation2 + $0x10] sm:$0xff] %vm1023, %v753
    %1043 = vst.msk [vmem:[#allocation2 + $0x18] sm:$0xff] %vm1023, %v754
    %1044 = vst.msk [vmem:[#allocation2 + $0x20] sm:$0xff] %vm1023, %v755
    %1045 = vst.msk [vmem:[#allocation2 + $0x28] sm:$0xff] %vm1023, %v756
    %1046 = vst.msk [vmem:[#allocation2 + $0x30] sm:$0xff] %vm1023, %v757
    %1047 = vst.msk [vmem:[#allocation2 + $0x38] sm:$0xff] %vm1023, %v758
    %1048 = vst.msk [vmem:[#allocation2 + $0x40] sm:$0xff] %vm1023, %v759
    %1049 = vst.msk [vmem:[#allocation2 + $0x48] sm:$0xff] %vm1023, %v760
    %1050 = vst.msk [vmem:[#allocation2 + $0x50] sm:$0xff] %vm1023, %v761
    %1051 = vst.msk [vmem:[#allocation2 + $0x58] sm:$0xff] %vm1023, %v762
    %1052 = vst.msk [vmem:[#allocation2 + $0x60] sm:$0xff] %vm1023, %v763
    %1053 = vst.msk [vmem:[#allocation2 + $0x68] sm:$0xff] %vm1023, %v764
    %1054 = vst.msk [vmem:[#allocation2 + $0x70] sm:$0xff] %vm1023, %v765
    %1055 = vst.msk [vmem:[#allocation2 + $0x78] sm:$0xff] %vm1023, %v766
  $region29: #{tpu_custom_call.1} parent=0 // pred_fallthru
    _
  // Predicated region
  $region30: #{tpu_custom_call.1} parent=0 // pred_check
    %p1056 = pneg %p17
  $region31: #{tpu_custom_call.1} parent=0 // pred_check_branch
    %1058 = sbr.rel (%p1056) target = $region33
  $region32: #{tpu_custom_call.1} parent=0 // pred_region
    %v1059 = vld [vmem:[#allocation2] sm:$0xff]
    %v1060 = vld [vmem:[#allocation2 + $0x8] sm:$0xff]
    %v1061 = vld [vmem:[#allocation2 + $0x10] sm:$0xff]
    %v1062 = vld [vmem:[#allocation2 + $0x18] sm:$0xff]
    %v1063 = vld [vmem:[#allocation2 + $0x20] sm:$0xff]
    %v1064 = vld [vmem:[#allocation2 + $0x28] sm:$0xff]
    %v1065 = vld [vmem:[#allocation2 + $0x30] sm:$0xff]
    %v1066 = vld [vmem:[#allocation2 + $0x38] sm:$0xff]
    %v1067 = vld [vmem:[#allocation2 + $0x40] sm:$0xff]
    %v1068 = vld [vmem:[#allocation2 + $0x48] sm:$0xff]
    %v1069 = vld [vmem:[#allocation2 + $0x50] sm:$0xff]
    %v1070 = vld [vmem:[#allocation2 + $0x58] sm:$0xff]
    %v1071 = vld [vmem:[#allocation2 + $0x60] sm:$0xff]
    %v1072 = vld [vmem:[#allocation2 + $0x68] sm:$0xff]
    %v1073 = vld [vmem:[#allocation2 + $0x70] sm:$0xff]
    %v1074 = vld [vmem:[#allocation2 + $0x78] sm:$0xff]
    %v1075 = vld [vmem:[#allocation3] sm:$0xff]
    %v1076 = vld [vmem:[#allocation3 + $0x8] sm:$0xff]
    %v1077 = vld [vmem:[#allocation3 + $0x10] sm:$0xff]
    %v1078 = vld [vmem:[#allocation3 + $0x18] sm:$0xff]
    %v1079 = vld [vmem:[#allocation3 + $0x20] sm:$0xff]
    %v1080 = vld [vmem:[#allocation3 + $0x28] sm:$0xff]
    %v1081 = vld [vmem:[#allocation3 + $0x30] sm:$0xff]
    %v1082 = vld [vmem:[#allocation3 + $0x38] sm:$0xff]
    %v1083 = vld [vmem:[#allocation3 + $0x40] sm:$0xff]
    %v1084 = vld [vmem:[#allocation3 + $0x48] sm:$0xff]
    %v1085 = vld [vmem:[#allocation3 + $0x50] sm:$0xff]
    %v1086 = vld [vmem:[#allocation3 + $0x58] sm:$0xff]
    %v1087 = vld [vmem:[#allocation3 + $0x60] sm:$0xff]
    %v1088 = vld [vmem:[#allocation3 + $0x68] sm:$0xff]
    %v1089 = vld [vmem:[#allocation3 + $0x70] sm:$0xff]
    %v1090 = vld [vmem:[#allocation3 + $0x78] sm:$0xff]
    %v1091 = vlog2.pop %v1075
    %v1092 = vmul.f32 %v1091, 0.6931472
    %v1093 = vlog2.pop %v1076
    %v1094 = vmul.f32 %v1093, 0.6931472
    %v1095 = vlog2.pop %v1077
    %v1096 = vmul.f32 %v1095, 0.6931472
    %v1097 = vlog2.pop %v1078
    %v1098 = vmul.f32 %v1097, 0.6931472
    %v1099 = vlog2.pop %v1079
    %v1100 = vmul.f32 %v1099, 0.6931472
    %v1101 = vlog2.pop %v1080
    %v1102 = vmul.f32 %v1101, 0.6931472
    %v1103 = vlog2.pop %v1081
    %v1104 = vmul.f32 %v1103, 0.6931472
    %v1105 = vlog2.pop %v1082
    %v1106 = vmul.f32 %v1105, 0.6931472
    %v1107 = vlog2.pop %v1083
    %v1108 = vmul.f32 %v1107, 0.6931472
    %v1109 = vlog2.pop %v1084
    %v1110 = vmul.f32 %v1109, 0.6931472
    %v1111 = vlog2.pop %v1085
    %v1112 = vmul.f32 %v1111, 0.6931472
    %v1113 = vlog2.pop %v1086
    %v1114 = vmul.f32 %v1113, 0.6931472
    %v1115 = vlog2.pop %v1087
    %v1116 = vmul.f32 %v1115, 0.6931472
    %v1117 = vlog2.pop %v1088
    %v1118 = vmul.f32 %v1117, 0.6931472
    %v1119 = vlog2.pop %v1089
    %v1120 = vmul.f32 %v1119, 0.6931472
    %v1121 = vlog2.pop %v1090
    %v1122 = vmul.f32 %v1121, 0.6931472
    %v1123 = vadd.f32 %v1059, %v1092
    %v1124 = vadd.f32 %v1060, %v1094
    %v1125 = vadd.f32 %v1061, %v1096
    %v1126 = vadd.f32 %v1062, %v1098
    %v1127 = vadd.f32 %v1063, %v1100
    %v1128 = vadd.f32 %v1064, %v1102
    %v1129 = vadd.f32 %v1065, %v1104
    %v1130 = vadd.f32 %v1066, %v1106
    %v1131 = vadd.f32 %v1067, %v1108
    %v1132 = vadd.f32 %v1068, %v1110
    %v1133 = vadd.f32 %v1069, %v1112
    %v1134 = vadd.f32 %v1070, %v1114
    %v1135 = vadd.f32 %v1071, %v1116
    %v1136 = vadd.f32 %v1072, %v1118
    %v1137 = vadd.f32 %v1073, %v1120
    %v1138 = vadd.f32 %v1074, %v1122
    %v1139 = vld [vmem:[%s3] sm:$0xff]
    %v1140 = vld [vmem:[%s3 + $0x8] sm:$0xff]
    %v1141 = vld [vmem:[%s3 + $0x10] sm:$0xff]
    %v1142 = vld [vmem:[%s3 + $0x18] sm:$0xff]
    %v1143 = vld [vmem:[%s3 + $0x20] sm:$0xff]
    %v1144 = vld [vmem:[%s3 + $0x28] sm:$0xff]
    %v1145 = vld [vmem:[%s3 + $0x30] sm:$0xff]
    %v1146 = vld [vmem:[%s3 + $0x38] sm:$0xff]
    %v1147 = vld [vmem:[%s3 + $0x40] sm:$0xff]
    %v1148 = vld [vmem:[%s3 + $0x48] sm:$0xff]
    %v1149 = vld [vmem:[%s3 + $0x50] sm:$0xff]
    %v1150 = vld [vmem:[%s3 + $0x58] sm:$0xff]
    %v1151 = vld [vmem:[%s3 + $0x60] sm:$0xff]
    %v1152 = vld [vmem:[%s3 + $0x68] sm:$0xff]
    %v1153 = vld [vmem:[%s3 + $0x70] sm:$0xff]
    %v1154 = vld [vmem:[%s3 + $0x78] sm:$0xff]
    %v1155 = vld [vmem:[%s2] sm:$0xff]
    %v1156 = vld [vmem:[%s2 + $0x8] sm:$0xff]
    %v1157 = vld [vmem:[%s2 + $0x10] sm:$0xff]
    %v1158 = vld [vmem:[%s2 + $0x18] sm:$0xff]
    %v1159 = vld [vmem:[%s2 + $0x20] sm:$0xff]
    %v1160 = vld [vmem:[%s2 + $0x28] sm:$0xff]
    %v1161 = vld [vmem:[%s2 + $0x30] sm:$0xff]
    %v1162 = vld [vmem:[%s2 + $0x38] sm:$0xff]
    %v1163 = vld [vmem:[%s2 + $0x40] sm:$0xff]
    %v1164 = vld [vmem:[%s2 + $0x48] sm:$0xff]
    %v1165 = vld [vmem:[%s2 + $0x50] sm:$0xff]
    %v1166 = vld [vmem:[%s2 + $0x58] sm:$0xff]
    %v1167 = vld [vmem:[%s2 + $0x60] sm:$0xff]
    %v1168 = vld [vmem:[%s2 + $0x68] sm:$0xff]
    %v1169 = vld [vmem:[%s2 + $0x70] sm:$0xff]
    %v1170 = vld [vmem:[%s2 + $0x78] sm:$0xff]
    %v1171 = vrcp.pop %v1155
    %v1172 = vmul.f32 %v1139, %v1171
    %v1173 = vrcp.pop %v1156
    %v1174 = vmul.f32 %v1140, %v1173
    %v1175 = vrcp.pop %v1157
    %v1176 = vmul.f32 %v1141, %v1175
    %v1177 = vrcp.pop %v1158
    %v1178 = vmul.f32 %v1142, %v1177
    %v1179 = vrcp.pop %v1159
    %v1180 = vmul.f32 %v1143, %v1179
    %v1181 = vrcp.pop %v1160
    %v1182 = vmul.f32 %v1144, %v1181
    %v1183 = vrcp.pop %v1161
    %v1184 = vmul.f32 %v1145, %v1183
    %v1185 = vrcp.pop %v1162
    %v1186 = vmul.f32 %v1146, %v1185
    %v1187 = vrcp.pop %v1163
    %v1188 = vmul.f32 %v1147, %v1187
    %v1189 = vrcp.pop %v1164
    %v1190 = vmul.f32 %v1148, %v1189
    %v1191 = vrcp.pop %v1165
    %v1192 = vmul.f32 %v1149, %v1191
    %v1193 = vrcp.pop %v1166
    %v1194 = vmul.f32 %v1150, %v1193
    %v1195 = vrcp.pop %v1167
    %v1196 = vmul.f32 %v1151, %v1195
    %v1197 = vrcp.pop %v1168
    %v1198 = vmul.f32 %v1152, %v1197
    %v1199 = vrcp.pop %v1169
    %v1200 = vmul.f32 %v1153, %v1199
    %v1201 = vrcp.pop %v1170
    %v1202 = vmul.f32 %v1154, %v1201
    %v1203 = vsub.f32 %v1172, %v1123
    %v1204 = vsub.f32 %v1174, %v1124
    %v1205 = vsub.f32 %v1176, %v1125
    %v1206 = vsub.f32 %v1178, %v1126
    %v1207 = vsub.f32 %v1180, %v1127
    %v1208 = vsub.f32 %v1182, %v1128
    %v1209 = vsub.f32 %v1184, %v1129
    %v1210 = vsub.f32 %v1186, %v1130
    %v1211 = vsub.f32 %v1188, %v1131
    %v1212 = vsub.f32 %v1190, %v1132
    %v1213 = vsub.f32 %v1192, %v1133
    %v1214 = vsub.f32 %v1194, %v1134
    %v1215 = vsub.f32 %v1196, %v1135
    %v1216 = vsub.f32 %v1198, %v1136
    %v1217 = vsub.f32 %v1200, %v1137
    %v1218 = vsub.f32 %v1202, %v1138
    %v1219 = vmul.f32 %v1203, -1.0
    %v1220 = vmul.f32 %v1204, -1.0
    %v1221 = vmul.f32 %v1205, -1.0
    %v1222 = vmul.f32 %v1206, -1.0
    %v1223 = vmul.f32 %v1207, -1.0
    %v1224 = vmul.f32 %v1208, -1.0
    %v1225 = vmul.f32 %v1209, -1.0
    %v1226 = vmul.f32 %v1210, -1.0
    %v1227 = vmul.f32 %v1211, -1.0
    %v1228 = vmul.f32 %v1212, -1.0
    %v1229 = vmul.f32 %v1213, -1.0
    %v1230 = vmul.f32 %v1214, -1.0
    %v1231 = vmul.f32 %v1215, -1.0
    %v1232 = vmul.f32 %v1216, -1.0
    %v1233 = vmul.f32 %v1217, -1.0
    %v1234 = vmul.f32 %v1218, -1.0
    %vm1235 = vcmask 7168
    %1236 = vst.msk [vmem:[%s4] sm:$0xff] %vm1235, %v1219
    %1237 = vst.msk [vmem:[%s4 + $0x8] sm:$0xff] %vm1235, %v1220
    %1238 = vst.msk [vmem:[%s4 + $0x10] sm:$0xff] %vm1235, %v1221
    %1239 = vst.msk [vmem:[%s4 + $0x18] sm:$0xff] %vm1235, %v1222
    %1240 = vst.msk [vmem:[%s4 + $0x20] sm:$0xff] %vm1235, %v1223
    %1241 = vst.msk [vmem:[%s4 + $0x28] sm:$0xff] %vm1235, %v1224
    %1242 = vst.msk [vmem:[%s4 + $0x30] sm:$0xff] %vm1235, %v1225
    %1243 = vst.msk [vmem:[%s4 + $0x38] sm:$0xff] %vm1235, %v1226
    %1244 = vst.msk [vmem:[%s4 + $0x40] sm:$0xff] %vm1235, %v1227
    %1245 = vst.msk [vmem:[%s4 + $0x48] sm:$0xff] %vm1235, %v1228
    %1246 = vst.msk [vmem:[%s4 + $0x50] sm:$0xff] %vm1235, %v1229
    %1247 = vst.msk [vmem:[%s4 + $0x58] sm:$0xff] %vm1235, %v1230
    %1248 = vst.msk [vmem:[%s4 + $0x60] sm:$0xff] %vm1235, %v1231
    %1249 = vst.msk [vmem:[%s4 + $0x68] sm:$0xff] %vm1235, %v1232
    %1250 = vst.msk [vmem:[%s4 + $0x70] sm:$0xff] %vm1235, %v1233
    %1251 = vst.msk [vmem:[%s4 + $0x78] sm:$0xff] %vm1235, %v1234
  $region33: #{tpu_custom_call.1} parent=0 // pred_fallthru
    _
  // Predicated region
  $region34: #{tpu_custom_call.1} parent=0 // pred_check
    _
  $region35: #{tpu_custom_call.1} parent=0 // pred_check_branch
    %1253 = sbr.rel (0) target = $region37
  $region36: #{tpu_custom_call.1} parent=0 // pred_region
    _
  $region37: #{tpu_custom_call.1} parent=0 // pred_fallthru
    _
  // Predicated region
  $region38: #{tpu_custom_call.1} parent=0 // pred_check
    _
  $region39: #{tpu_custom_call.1} parent=0 // pred_check_branch
    %1255 = sbr.rel (0) target = $region41
  $region40: #{tpu_custom_call.1} parent=0 // pred_region
    _
  $region41: #{tpu_custom_call.1} parent=0 // pred_fallthru
    _

</llo_original>
